<compile_context>
chip_gen: v5e
topology: v5e:2x2
jax: 0.10.0
libtpu: 0.0.40
codegen_flags: <defaults>
</compile_context>

<pallas_src>
import jax
import jax.numpy as jnp
from jax import lax
from jax.experimental import pallas as pl
from jax.experimental.pallas import tpu as pltpu


def _shakespeare_lstm_kernel(
    tok_ref,     # (T*B, 1) int32 time-major token ids (rows t*B:(t+1)*B = timestep t)
    xw0tab_ref,  # (Vemb, 4H) f32 fused lookup table: emb @ Wih0 + b0
    whh0_ref,    # (H, 4H)   layer-0 hidden->gates weights
    w1_ref,      # (2H, 4H)  fused layer-1 weights [Wih1; Whh1]
    b1_ref,      # (1, 4H)   layer-1 combined bias (b_ih + b_hh)
    wdec_ref,    # (H, V)    decoder weights (pre-transposed)
    bdec_ref,    # (1, V)    decoder bias
    pred_ref,    # (B, V)    output logits
):
    B, V = pred_ref.shape
    TB = tok_ref.shape[0]
    T = TB // B
    Vemb = xw0tab_ref.shape[0]
    H = whh0_ref.shape[0]
    H4 = 4 * H

    # Fused embedding + layer-0 input projection + bias for ALL timesteps at once,
    # entirely in-kernel: one-hot(token) @ (emb @ Wih0 + b0).  One small MXU call;
    # the result stays vreg-resident (no VMEM scratch, no HBM embedded sequence).
    onehot = (
        tok_ref[...] == lax.broadcasted_iota(jnp.int32, (TB, Vemb), 1)
    ).astype(jnp.float32)
    xw0 = jnp.dot(onehot, xw0tab_ref[...], preferred_element_type=jnp.float32)

    # Weights are VMEM-resident; load once outside the recurrence.
    whh0 = whh0_ref[...]
    w1 = w1_ref[...]
    # Hoist the bias broadcast out of the unrolled loop (JAX does not CSE it).
    b1 = jnp.broadcast_to(b1_ref[...], (B, H4))

    def gates_to_hc(gates, c):
        # One full-width sigmoid + one full-width tanh (one EUP vreg each), then
        # cheap static lane slices.  Gate order (i, f, g, o) as in torch.
        sig = jax.nn.sigmoid(gates)
        th = jnp.tanh(gates)
        i = sig[:, 0 * H:1 * H]
        f = sig[:, 1 * H:2 * H]
        g = th[:, 2 * H:3 * H]
        o = sig[:, 3 * H:4 * H]
        c_new = f * c + i * g
        h_new = o * jnp.tanh(c_new)
        return h_new, c_new

    # Fully unrolled recurrence with vreg-carried state and *static* slices of the
    # vreg-resident xw0 (T is small and fixed, so a Python loop is fine here).
    z = jnp.zeros((B, H), jnp.float32)
    h1, c1, h2, c2 = z, z, z, z
    for t in range(T):
        # Layer 0: only the recurrent dot remains on the critical path.
        g0 = xw0[t * B:(t + 1) * B, :] + jnp.dot(
            h1, whh0, preferred_element_type=jnp.float32
        )
        h1, c1 = gates_to_hc(g0, c1)
        # Layer 1: single fused dot on [h1, h2] (halves MXU push/pop on this path).
        h12 = jnp.concatenate([h1, h2], axis=-1)
        g1 = jnp.dot(h12, w1, preferred_element_type=jnp.float32) + b1
        h2, c2 = gates_to_hc(g1, c2)

    # Decoder on the final layer-2 hidden state (== torch h_n[-1]).
    pred_ref[...] = (
        jnp.dot(h2, wdec_ref[...], preferred_element_type=jnp.float32)
        + bdec_ref[...]
    )


def shakespeare_forward(tokens, params):
    """tokens: (B, T) int32. Returns logits (B, V) f32 (matches the torch module)."""
    B, T = tokens.shape
    V = params["wdec"].shape[1]

    # Pad batch to a full f32 sublane (multiple of 8) so all tiles are unmasked.
    B_pad = max(8, ((B + 7) // 8) * 8)
    tokens_p = jnp.pad(tokens, ((0, B_pad - B), (0, 0)))
    # Only the tiny int token matrix is rearranged outside the kernel; the embedded
    # sequence never exists in HBM.
    tok_tm = tokens_p.T.reshape(-1, 1).astype(jnp.int32)            # (T*B_pad, 1)

    # Fused lookup table: emb @ Wih0 + b0 -> (Vemb, 4H).  Row v is the layer-0
    # pre-activation contribution of token v, so the in-kernel one-hot matmul yields
    # the biased gates directly (each one-hot row sums to exactly 1).
    xw0_tab = (
        jnp.dot(params["emb"], params["wih0"], precision=jax.lax.Precision.HIGHEST)
        + params["b0"]
    )
    # Fused layer-1 weight [Wih1; Whh1] -> (2H, 4H): one MXU call per step for layer 1.
    w1 = jnp.concatenate([params["wih1"], params["whh1"]], axis=0)
    # TODO(synk): xw0_tab / w1 folding could be pre-baked into the param dict (and on
    # v7x a 2-core grid split of the batch added) if this ever runs at serving scale.

    vmem = pl.BlockSpec(memory_space=pltpu.MemorySpace.VMEM)
    logits_pad = pl.pallas_call(
        _shakespeare_lstm_kernel,
        out_shape=jax.ShapeDtypeStruct((B_pad, V), jnp.float32),
        in_specs=[vmem] * 7,
        out_specs=vmem,
    )(
        tok_tm, xw0_tab, params["whh0"], w1, params["b1"],
        params["wdec"], params["bdec"],
    )
    return logits_pad[:B]


def reference_forward(tokens, params):
    """Pure-JAX reference matching torch semantics (for validation)."""
    hp = jax.lax.Precision.HIGHEST
    emb = params["emb"][tokens]                # (B, T, E)
    x_tm = jnp.transpose(emb, (1, 0, 2))       # (T, B, E)
    B = tokens.shape[0]
    H = params["whh0"].shape[0]

    def cell(x, h, c, wih, whh, b):
        g = jnp.dot(x, wih, precision=hp) + jnp.dot(h, whh, precision=hp) + b
        i = jax.nn.sigmoid(g[:, 0 * H:1 * H])
        f = jax.nn.sigmoid(g[:, 1 * H:2 * H])
        gg = jnp.tanh(g[:, 2 * H:3 * H])
        o = jax.nn.sigmoid(g[:, 3 * H:4 * H])
        c_new = f * c + i * gg
        h_new = o * jnp.tanh(c_new)
        return h_new, c_new

    def step(carry, x_t):
        h1, c1, h2, c2 = carry
        h1, c1 = cell(x_t, h1, c1, params["wih0"], params["whh0"], params["b0"])
        h2, c2 = cell(h1, h2, c2, params["wih1"], params["whh1"], params["b1"])
        return (h1, c1, h2, c2), None

    z = jnp.zeros((B, H), jnp.float32)
    (h1, c1, h2, c2), _ = jax.lax.scan(step, (z, z, z, z), x_tm)
    return jnp.dot(h2, params["wdec"], precision=hp) + params["bdec"]


def init_params(key, vocab, embedding_dim, hidden):
    """Deterministic synthetic init (shapes match the PyTorch module)."""
    ks = jax.random.split(key, 12)
    bound = 1.0 / jnp.sqrt(hidden)
    u = lambda k, shape: jax.random.uniform(k, shape, jnp.float32, -bound, bound)
    return {
        "emb":  jax.random.normal(ks[0], (vocab, embedding_dim), jnp.float32),
        # nn.LSTM layer 0: weight_ih_l0 (4H, E), weight_hh_l0 (4H, H) -> pre-transposed
        "wih0": u(ks[1], (embedding_dim, 4 * hidden)),
        "whh0": u(ks[2], (hidden, 4 * hidden)),
        "b0":   u(ks[3], (1, 4 * hidden)) + u(ks[4], (1, 4 * hidden)),  # b_ih + b_hh
        # nn.LSTM layer 1: weight_ih_l1 (4H, H), weight_hh_l1 (4H, H)
        "wih1": u(ks[5], (hidden, 4 * hidden)),
        "whh1": u(ks[6], (hidden, 4 * hidden)),
        "b1":   u(ks[7], (1, 4 * hidden)) + u(ks[8], (1, 4 * hidden)),
        # nn.Linear(hidden, vocab): weight (V, H) -> pre-transposed to (H, V)
        "wdec": u(ks[9], (hidden, vocab)),
        "bdec": u(ks[10], (1, vocab)),
    }


if __name__ == "__main__":
    # Small shapes consistent with the module (vocab=dict_size, seq, hidden, emb_dim).
    B, T, V, E, H = 2, 8, 32, 8, 32

    key = jax.random.PRNGKey(0)
    k_tok, k_par = jax.random.split(key)
    tokens = jax.random.randint(k_tok, (B, T), 0, V, dtype=jnp.int32)
    params = init_params(k_par, vocab=V, embedding_dim=E, hidden=H)

    logits = jax.jit(shakespeare_forward)(tokens, params)
    logits = jax.block_until_ready(logits)

    ref = reference_forward(tokens, params)
    assert logits.shape == (B, V)
    assert jnp.allclose(logits, ref, rtol=1e-3, atol=1e-3), "mismatch vs JAX reference"

    print("KERNEL_OK")
</pallas_src>

<mosaic_0001>
module attributes {stable_mosaic.version = 11 : i64} {
  func.func @_shakespeare_lstm_kernel(%arg0: memref<64x1xi32, #tpu.memory_space<vmem>>, %arg1: memref<32x128xf32, #tpu.memory_space<vmem>>, %arg2: memref<32x128xf32, #tpu.memory_space<vmem>>, %arg3: memref<64x128xf32, #tpu.memory_space<vmem>>, %arg4: memref<1x128xf32, #tpu.memory_space<vmem>>, %arg5: memref<32x32xf32, #tpu.memory_space<vmem>>, %arg6: memref<1x32xf32, #tpu.memory_space<vmem>>, %arg7: memref<8x32xf32, #tpu.memory_space<vmem>>) attributes {dimension_semantics = [], scalar_prefetch = 0 : i64, scratch_operands = 0 : i64, tpu.core_type = #tpu.core_type<tc>} {
    %c0 = arith.constant 0 : index
    %c0_0 = arith.constant 0 : index
    %0 = vector.load %arg0[%c0, %c0_0] : memref<64x1xi32, #tpu.memory_space<vmem>>, vector<64x1xi32>
    %1 = tpu.iota {dimensions = array<i32: 1>} : vector<64x32xi32>
    %2 = vector.broadcast %0 : vector<64x1xi32> to vector<64x32xi32>
    %3 = arith.cmpi eq, %2, %1 : vector<64x32xi32>
    %4 = arith.extui %3 : vector<64x32xi1> to vector<64x32xi32>
    %5 = arith.sitofp %4 : vector<64x32xi32> to vector<64x32xf32>
    %c0_1 = arith.constant 0 : index
    %c0_2 = arith.constant 0 : index
    %6 = vector.load %arg1[%c0_1, %c0_2] : memref<32x128xf32, #tpu.memory_space<vmem>>, vector<32x128xf32>
    %cst = arith.constant dense<0.000000e+00> : vector<64x128xf32>
    %7 = tpu.matmul %5, %6, %cst {dimension_numbers = #tpu.dot_dimension_numbers<[1], [0], [0], [1], [0, 0, 1, 1], [], []>} : vector<64x32xf32>, vector<32x128xf32>, vector<64x128xf32> -> vector<64x128xf32>
    %c0_3 = arith.constant 0 : index
    %c0_4 = arith.constant 0 : index
    %8 = vector.load %arg2[%c0_3, %c0_4] : memref<32x128xf32, #tpu.memory_space<vmem>>, vector<32x128xf32>
    %c0_5 = arith.constant 0 : index
    %c0_6 = arith.constant 0 : index
    %9 = vector.load %arg3[%c0_5, %c0_6] : memref<64x128xf32, #tpu.memory_space<vmem>>, vector<64x128xf32>
    %c0_7 = arith.constant 0 : index
    %c0_8 = arith.constant 0 : index
    %10 = vector.load %arg4[%c0_7, %c0_8] : memref<1x128xf32, #tpu.memory_space<vmem>>, vector<1x128xf32>
    %11 = vector.shape_cast %10 : vector<1x128xf32> to vector<1x128xf32>
    %12 = vector.broadcast %11 : vector<1x128xf32> to vector<8x128xf32>
    %cst_9 = arith.constant 0.000000e+00 : f32
    %13 = vector.broadcast %cst_9 : f32 to vector<8x32xf32>
    %14 = vector.extract_strided_slice %7 {offsets = [0, 0], sizes = [8, 128], strides = [1, 1]} : vector<64x128xf32> to vector<8x128xf32>
    %cst_10 = arith.constant dense<0.000000e+00> : vector<8x128xf32>
    %15 = tpu.matmul %13, %8, %cst_10 {dimension_numbers = #tpu.dot_dimension_numbers<[1], [0], [0], [1], [0, 0, 1, 1], [], []>} : vector<8x32xf32>, vector<32x128xf32>, vector<8x128xf32> -> vector<8x128xf32>
    %16 = arith.addf %14, %15 : vector<8x128xf32>
    %17 = arith.negf %16 : vector<8x128xf32>
    %18 = math.exp %17 : vector<8x128xf32>
    %cst_11 = arith.constant 1.000000e+00 : f32
    %19 = vector.broadcast %cst_11 : f32 to vector<8x128xf32>
    %20 = arith.addf %19, %18 : vector<8x128xf32>
    %21 = arith.divf %19, %20 : vector<8x128xf32>
    %22 = math.tanh %16 : vector<8x128xf32>
    %23 = vector.extract_strided_slice %21 {offsets = [0, 0], sizes = [8, 32], strides = [1, 1]} : vector<8x128xf32> to vector<8x32xf32>
    %24 = vector.extract_strided_slice %21 {offsets = [0, 32], sizes = [8, 32], strides = [1, 1]} : vector<8x128xf32> to vector<8x32xf32>
    %25 = vector.extract_strided_slice %22 {offsets = [0, 64], sizes = [8, 32], strides = [1, 1]} : vector<8x128xf32> to vector<8x32xf32>
    %26 = vector.extract_strided_slice %21 {offsets = [0, 96], sizes = [8, 32], strides = [1, 1]} : vector<8x128xf32> to vector<8x32xf32>
    %27 = arith.mulf %24, %13 : vector<8x32xf32>
    %28 = arith.mulf %23, %25 : vector<8x32xf32>
    %29 = arith.addf %27, %28 : vector<8x32xf32>
    %30 = math.tanh %29 : vector<8x32xf32>
    %31 = arith.mulf %26, %30 : vector<8x32xf32>
    %32 = tpu.concatenate %31, %13 in 1 : vector<8x32xf32>, vector<8x32xf32> -> vector<8x64xf32>
    %cst_12 = arith.constant dense<0.000000e+00> : vector<8x128xf32>
    %33 = tpu.matmul %32, %9, %cst_12 {dimension_numbers = #tpu.dot_dimension_numbers<[1], [0], [0], [1], [0, 0, 1, 1], [], []>} : vector<8x64xf32>, vector<64x128xf32>, vector<8x128xf32> -> vector<8x128xf32>
    %34 = arith.addf %33, %12 : vector<8x128xf32>
    %35 = arith.negf %34 : vector<8x128xf32>
    %36 = math.exp %35 : vector<8x128xf32>
    %cst_13 = arith.constant 1.000000e+00 : f32
    %37 = vector.broadcast %cst_13 : f32 to vector<8x128xf32>
    %38 = arith.addf %37, %36 : vector<8x128xf32>
    %39 = arith.divf %37, %38 : vector<8x128xf32>
    %40 = math.tanh %34 : vector<8x128xf32>
    %41 = vector.extract_strided_slice %39 {offsets = [0, 0], sizes = [8, 32], strides = [1, 1]} : vector<8x128xf32> to vector<8x32xf32>
    %42 = vector.extract_strided_slice %39 {offsets = [0, 32], sizes = [8, 32], strides = [1, 1]} : vector<8x128xf32> to vector<8x32xf32>
    %43 = vector.extract_strided_slice %40 {offsets = [0, 64], sizes = [8, 32], strides = [1, 1]} : vector<8x128xf32> to vector<8x32xf32>
    %44 = vector.extract_strided_slice %39 {offsets = [0, 96], sizes = [8, 32], strides = [1, 1]} : vector<8x128xf32> to vector<8x32xf32>
    %45 = arith.mulf %42, %13 : vector<8x32xf32>
    %46 = arith.mulf %41, %43 : vector<8x32xf32>
    %47 = arith.addf %45, %46 : vector<8x32xf32>
    %48 = math.tanh %47 : vector<8x32xf32>
    %49 = arith.mulf %44, %48 : vector<8x32xf32>
    %50 = vector.extract_strided_slice %7 {offsets = [8, 0], sizes = [8, 128], strides = [1, 1]} : vector<64x128xf32> to vector<8x128xf32>
    %cst_14 = arith.constant dense<0.000000e+00> : vector<8x128xf32>
    %51 = tpu.matmul %31, %8, %cst_14 {dimension_numbers = #tpu.dot_dimension_numbers<[1], [0], [0], [1], [0, 0, 1, 1], [], []>} : vector<8x32xf32>, vector<32x128xf32>, vector<8x128xf32> -> vector<8x128xf32>
    %52 = arith.addf %50, %51 : vector<8x128xf32>
    %53 = arith.negf %52 : vector<8x128xf32>
    %54 = math.exp %53 : vector<8x128xf32>
    %cst_15 = arith.constant 1.000000e+00 : f32
    %55 = vector.broadcast %cst_15 : f32 to vector<8x128xf32>
    %56 = arith.addf %55, %54 : vector<8x128xf32>
    %57 = arith.divf %55, %56 : vector<8x128xf32>
    %58 = math.tanh %52 : vector<8x128xf32>
    %59 = vector.extract_strided_slice %57 {offsets = [0, 0], sizes = [8, 32], strides = [1, 1]} : vector<8x128xf32> to vector<8x32xf32>
    %60 = vector.extract_strided_slice %57 {offsets = [0, 32], sizes = [8, 32], strides = [1, 1]} : vector<8x128xf32> to vector<8x32xf32>
    %61 = vector.extract_strided_slice %58 {offsets = [0, 64], sizes = [8, 32], strides = [1, 1]} : vector<8x128xf32> to vector<8x32xf32>
    %62 = vector.extract_strided_slice %57 {offsets = [0, 96], sizes = [8, 32], strides = [1, 1]} : vector<8x128xf32> to vector<8x32xf32>
    %63 = arith.mulf %60, %29 : vector<8x32xf32>
    %64 = arith.mulf %59, %61 : vector<8x32xf32>
    %65 = arith.addf %63, %64 : vector<8x32xf32>
    %66 = math.tanh %65 : vector<8x32xf32>
    %67 = arith.mulf %62, %66 : vector<8x32xf32>
    %68 = tpu.concatenate %67, %49 in 1 : vector<8x32xf32>, vector<8x32xf32> -> vector<8x64xf32>
    %cst_16 = arith.constant dense<0.000000e+00> : vector<8x128xf32>
    %69 = tpu.matmul %68, %9, %cst_16 {dimension_numbers = #tpu.dot_dimension_numbers<[1], [0], [0], [1], [0, 0, 1, 1], [], []>} : vector<8x64xf32>, vector<64x128xf32>, vector<8x128xf32> -> vector<8x128xf32>
    %70 = arith.addf %69, %12 : vector<8x128xf32>
    %71 = arith.negf %70 : vector<8x128xf32>
    %72 = math.exp %71 : vector<8x128xf32>
    %cst_17 = arith.constant 1.000000e+00 : f32
    %73 = vector.broadcast %cst_17 : f32 to vector<8x128xf32>
    %74 = arith.addf %73, %72 : vector<8x128xf32>
    %75 = arith.divf %73, %74 : vector<8x128xf32>
    %76 = math.tanh %70 : vector<8x128xf32>
    %77 = vector.extract_strided_slice %75 {offsets = [0, 0], sizes = [8, 32], strides = [1, 1]} : vector<8x128xf32> to vector<8x32xf32>
    %78 = vector.extract_strided_slice %75 {offsets = [0, 32], sizes = [8, 32], strides = [1, 1]} : vector<8x128xf32> to vector<8x32xf32>
    %79 = vector.extract_strided_slice %76 {offsets = [0, 64], sizes = [8, 32], strides = [1, 1]} : vector<8x128xf32> to vector<8x32xf32>
    %80 = vector.extract_strided_slice %75 {offsets = [0, 96], sizes = [8, 32], strides = [1, 1]} : vector<8x128xf32> to vector<8x32xf32>
    %81 = arith.mulf %78, %47 : vector<8x32xf32>
    %82 = arith.mulf %77, %79 : vector<8x32xf32>
    %83 = arith.addf %81, %82 : vector<8x32xf32>
    %84 = math.tanh %83 : vector<8x32xf32>
    %85 = arith.mulf %80, %84 : vector<8x32xf32>
    %86 = vector.extract_strided_slice %7 {offsets = [16, 0], sizes = [8, 128], strides = [1, 1]} : vector<64x128xf32> to vector<8x128xf32>
    %cst_18 = arith.constant dense<0.000000e+00> : vector<8x128xf32>
    %87 = tpu.matmul %67, %8, %cst_18 {dimension_numbers = #tpu.dot_dimension_numbers<[1], [0], [0], [1], [0, 0, 1, 1], [], []>} : vector<8x32xf32>, vector<32x128xf32>, vector<8x128xf32> -> vector<8x128xf32>
    %88 = arith.addf %86, %87 : vector<8x128xf32>
    %89 = arith.negf %88 : vector<8x128xf32>
    %90 = math.exp %89 : vector<8x128xf32>
    %cst_19 = arith.constant 1.000000e+00 : f32
    %91 = vector.broadcast %cst_19 : f32 to vector<8x128xf32>
    %92 = arith.addf %91, %90 : vector<8x128xf32>
    %93 = arith.divf %91, %92 : vector<8x128xf32>
    %94 = math.tanh %88 : vector<8x128xf32>
    %95 = vector.extract_strided_slice %93 {offsets = [0, 0], sizes = [8, 32], strides = [1, 1]} : vector<8x128xf32> to vector<8x32xf32>
    %96 = vector.extract_strided_slice %93 {offsets = [0, 32], sizes = [8, 32], strides = [1, 1]} : vector<8x128xf32> to vector<8x32xf32>
    %97 = vector.extract_strided_slice %94 {offsets = [0, 64], sizes = [8, 32], strides = [1, 1]} : vector<8x128xf32> to vector<8x32xf32>
    %98 = vector.extract_strided_slice %93 {offsets = [0, 96], sizes = [8, 32], strides = [1, 1]} : vector<8x128xf32> to vector<8x32xf32>
    %99 = arith.mulf %96, %65 : vector<8x32xf32>
    %100 = arith.mulf %95, %97 : vector<8x32xf32>
    %101 = arith.addf %99, %100 : vector<8x32xf32>
    %102 = math.tanh %101 : vector<8x32xf32>
    %103 = arith.mulf %98, %102 : vector<8x32xf32>
    %104 = tpu.concatenate %103, %85 in 1 : vector<8x32xf32>, vector<8x32xf32> -> vector<8x64xf32>
    %cst_20 = arith.constant dense<0.000000e+00> : vector<8x128xf32>
    %105 = tpu.matmul %104, %9, %cst_20 {dimension_numbers = #tpu.dot_dimension_numbers<[1], [0], [0], [1], [0, 0, 1, 1], [], []>} : vector<8x64xf32>, vector<64x128xf32>, vector<8x128xf32> -> vector<8x128xf32>
    %106 = arith.addf %105, %12 : vector<8x128xf32>
    %107 = arith.negf %106 : vector<8x128xf32>
    %108 = math.exp %107 : vector<8x128xf32>
    %cst_21 = arith.constant 1.000000e+00 : f32
    %109 = vector.broadcast %cst_21 : f32 to vector<8x128xf32>
    %110 = arith.addf %109, %108 : vector<8x128xf32>
    %111 = arith.divf %109, %110 : vector<8x128xf32>
    %112 = math.tanh %106 : vector<8x128xf32>
    %113 = vector.extract_strided_slice %111 {offsets = [0, 0], sizes = [8, 32], strides = [1, 1]} : vector<8x128xf32> to vector<8x32xf32>
    %114 = vector.extract_strided_slice %111 {offsets = [0, 32], sizes = [8, 32], strides = [1, 1]} : vector<8x128xf32> to vector<8x32xf32>
    %115 = vector.extract_strided_slice %112 {offsets = [0, 64], sizes = [8, 32], strides = [1, 1]} : vector<8x128xf32> to vector<8x32xf32>
    %116 = vector.extract_strided_slice %111 {offsets = [0, 96], sizes = [8, 32], strides = [1, 1]} : vector<8x128xf32> to vector<8x32xf32>
    %117 = arith.mulf %114, %83 : vector<8x32xf32>
    %118 = arith.mulf %113, %115 : vector<8x32xf32>
    %119 = arith.addf %117, %118 : vector<8x32xf32>
    %120 = math.tanh %119 : vector<8x32xf32>
    %121 = arith.mulf %116, %120 : vector<8x32xf32>
    %122 = vector.extract_strided_slice %7 {offsets = [24, 0], sizes = [8, 128], strides = [1, 1]} : vector<64x128xf32> to vector<8x128xf32>
    %cst_22 = arith.constant dense<0.000000e+00> : vector<8x128xf32>
    %123 = tpu.matmul %103, %8, %cst_22 {dimension_numbers = #tpu.dot_dimension_numbers<[1], [0], [0], [1], [0, 0, 1, 1], [], []>} : vector<8x32xf32>, vector<32x128xf32>, vector<8x128xf32> -> vector<8x128xf32>
    %124 = arith.addf %122, %123 : vector<8x128xf32>
    %125 = arith.negf %124 : vector<8x128xf32>
    %126 = math.exp %125 : vector<8x128xf32>
    %cst_23 = arith.constant 1.000000e+00 : f32
    %127 = vector.broadcast %cst_23 : f32 to vector<8x128xf32>
    %128 = arith.addf %127, %126 : vector<8x128xf32>
    %129 = arith.divf %127, %128 : vector<8x128xf32>
    %130 = math.tanh %124 : vector<8x128xf32>
    %131 = vector.extract_strided_slice %129 {offsets = [0, 0], sizes = [8, 32], strides = [1, 1]} : vector<8x128xf32> to vector<8x32xf32>
    %132 = vector.extract_strided_slice %129 {offsets = [0, 32], sizes = [8, 32], strides = [1, 1]} : vector<8x128xf32> to vector<8x32xf32>
    %133 = vector.extract_strided_slice %130 {offsets = [0, 64], sizes = [8, 32], strides = [1, 1]} : vector<8x128xf32> to vector<8x32xf32>
    %134 = vector.extract_strided_slice %129 {offsets = [0, 96], sizes = [8, 32], strides = [1, 1]} : vector<8x128xf32> to vector<8x32xf32>
    %135 = arith.mulf %132, %101 : vector<8x32xf32>
    %136 = arith.mulf %131, %133 : vector<8x32xf32>
    %137 = arith.addf %135, %136 : vector<8x32xf32>
    %138 = math.tanh %137 : vector<8x32xf32>
    %139 = arith.mulf %134, %138 : vector<8x32xf32>
    %140 = tpu.concatenate %139, %121 in 1 : vector<8x32xf32>, vector<8x32xf32> -> vector<8x64xf32>
    %cst_24 = arith.constant dense<0.000000e+00> : vector<8x128xf32>
    %141 = tpu.matmul %140, %9, %cst_24 {dimension_numbers = #tpu.dot_dimension_numbers<[1], [0], [0], [1], [0, 0, 1, 1], [], []>} : vector<8x64xf32>, vector<64x128xf32>, vector<8x128xf32> -> vector<8x128xf32>
    %142 = arith.addf %141, %12 : vector<8x128xf32>
    %143 = arith.negf %142 : vector<8x128xf32>
    %144 = math.exp %143 : vector<8x128xf32>
    %cst_25 = arith.constant 1.000000e+00 : f32
    %145 = vector.broadcast %cst_25 : f32 to vector<8x128xf32>
    %146 = arith.addf %145, %144 : vector<8x128xf32>
    %147 = arith.divf %145, %146 : vector<8x128xf32>
    %148 = math.tanh %142 : vector<8x128xf32>
    %149 = vector.extract_strided_slice %147 {offsets = [0, 0], sizes = [8, 32], strides = [1, 1]} : vector<8x128xf32> to vector<8x32xf32>
    %150 = vector.extract_strided_slice %147 {offsets = [0, 32], sizes = [8, 32], strides = [1, 1]} : vector<8x128xf32> to vector<8x32xf32>
    %151 = vector.extract_strided_slice %148 {offsets = [0, 64], sizes = [8, 32], strides = [1, 1]} : vector<8x128xf32> to vector<8x32xf32>
    %152 = vector.extract_strided_slice %147 {offsets = [0, 96], sizes = [8, 32], strides = [1, 1]} : vector<8x128xf32> to vector<8x32xf32>
    %153 = arith.mulf %150, %119 : vector<8x32xf32>
    %154 = arith.mulf %149, %151 : vector<8x32xf32>
    %155 = arith.addf %153, %154 : vector<8x32xf32>
    %156 = math.tanh %155 : vector<8x32xf32>
    %157 = arith.mulf %152, %156 : vector<8x32xf32>
    %158 = vector.extract_strided_slice %7 {offsets = [32, 0], sizes = [8, 128], strides = [1, 1]} : vector<64x128xf32> to vector<8x128xf32>
    %cst_26 = arith.constant dense<0.000000e+00> : vector<8x128xf32>
    %159 = tpu.matmul %139, %8, %cst_26 {dimension_numbers = #tpu.dot_dimension_numbers<[1], [0], [0], [1], [0, 0, 1, 1], [], []>} : vector<8x32xf32>, vector<32x128xf32>, vector<8x128xf32> -> vector<8x128xf32>
    %160 = arith.addf %158, %159 : vector<8x128xf32>
    %161 = arith.negf %160 : vector<8x128xf32>
    %162 = math.exp %161 : vector<8x128xf32>
    %cst_27 = arith.constant 1.000000e+00 : f32
    %163 = vector.broadcast %cst_27 : f32 to vector<8x128xf32>
    %164 = arith.addf %163, %162 : vector<8x128xf32>
    %165 = arith.divf %163, %164 : vector<8x128xf32>
    %166 = math.tanh %160 : vector<8x128xf32>
    %167 = vector.extract_strided_slice %165 {offsets = [0, 0], sizes = [8, 32], strides = [1, 1]} : vector<8x128xf32> to vector<8x32xf32>
    %168 = vector.extract_strided_slice %165 {offsets = [0, 32], sizes = [8, 32], strides = [1, 1]} : vector<8x128xf32> to vector<8x32xf32>
    %169 = vector.extract_strided_slice %166 {offsets = [0, 64], sizes = [8, 32], strides = [1, 1]} : vector<8x128xf32> to vector<8x32xf32>
    %170 = vector.extract_strided_slice %165 {offsets = [0, 96], sizes = [8, 32], strides = [1, 1]} : vector<8x128xf32> to vector<8x32xf32>
    %171 = arith.mulf %168, %137 : vector<8x32xf32>
    %172 = arith.mulf %167, %169 : vector<8x32xf32>
    %173 = arith.addf %171, %172 : vector<8x32xf32>
    %174 = math.tanh %173 : vector<8x32xf32>
    %175 = arith.mulf %170, %174 : vector<8x32xf32>
    %176 = tpu.concatenate %175, %157 in 1 : vector<8x32xf32>, vector<8x32xf32> -> vector<8x64xf32>
    %cst_28 = arith.constant dense<0.000000e+00> : vector<8x128xf32>
    %177 = tpu.matmul %176, %9, %cst_28 {dimension_numbers = #tpu.dot_dimension_numbers<[1], [0], [0], [1], [0, 0, 1, 1], [], []>} : vector<8x64xf32>, vector<64x128xf32>, vector<8x128xf32> -> vector<8x128xf32>
    %178 = arith.addf %177, %12 : vector<8x128xf32>
    %179 = arith.negf %178 : vector<8x128xf32>
    %180 = math.exp %179 : vector<8x128xf32>
    %cst_29 = arith.constant 1.000000e+00 : f32
    %181 = vector.broadcast %cst_29 : f32 to vector<8x128xf32>
    %182 = arith.addf %181, %180 : vector<8x128xf32>
    %183 = arith.divf %181, %182 : vector<8x128xf32>
    %184 = math.tanh %178 : vector<8x128xf32>
    %185 = vector.extract_strided_slice %183 {offsets = [0, 0], sizes = [8, 32], strides = [1, 1]} : vector<8x128xf32> to vector<8x32xf32>
    %186 = vector.extract_strided_slice %183 {offsets = [0, 32], sizes = [8, 32], strides = [1, 1]} : vector<8x128xf32> to vector<8x32xf32>
    %187 = vector.extract_strided_slice %184 {offsets = [0, 64], sizes = [8, 32], strides = [1, 1]} : vector<8x128xf32> to vector<8x32xf32>
    %188 = vector.extract_strided_slice %183 {offsets = [0, 96], sizes = [8, 32], strides = [1, 1]} : vector<8x128xf32> to vector<8x32xf32>
    %189 = arith.mulf %186, %155 : vector<8x32xf32>
    %190 = arith.mulf %185, %187 : vector<8x32xf32>
    %191 = arith.addf %189, %190 : vector<8x32xf32>
    %192 = math.tanh %191 : vector<8x32xf32>
    %193 = arith.mulf %188, %192 : vector<8x32xf32>
    %194 = vector.extract_strided_slice %7 {offsets = [40, 0], sizes = [8, 128], strides = [1, 1]} : vector<64x128xf32> to vector<8x128xf32>
    %cst_30 = arith.constant dense<0.000000e+00> : vector<8x128xf32>
    %195 = tpu.matmul %175, %8, %cst_30 {dimension_numbers = #tpu.dot_dimension_numbers<[1], [0], [0], [1], [0, 0, 1, 1], [], []>} : vector<8x32xf32>, vector<32x128xf32>, vector<8x128xf32> -> vector<8x128xf32>
    %196 = arith.addf %194, %195 : vector<8x128xf32>
    %197 = arith.negf %196 : vector<8x128xf32>
    %198 = math.exp %197 : vector<8x128xf32>
    %cst_31 = arith.constant 1.000000e+00 : f32
    %199 = vector.broadcast %cst_31 : f32 to vector<8x128xf32>
    %200 = arith.addf %199, %198 : vector<8x128xf32>
    %201 = arith.divf %199, %200 : vector<8x128xf32>
    %202 = math.tanh %196 : vector<8x128xf32>
    %203 = vector.extract_strided_slice %201 {offsets = [0, 0], sizes = [8, 32], strides = [1, 1]} : vector<8x128xf32> to vector<8x32xf32>
    %204 = vector.extract_strided_slice %201 {offsets = [0, 32], sizes = [8, 32], strides = [1, 1]} : vector<8x128xf32> to vector<8x32xf32>
    %205 = vector.extract_strided_slice %202 {offsets = [0, 64], sizes = [8, 32], strides = [1, 1]} : vector<8x128xf32> to vector<8x32xf32>
    %206 = vector.extract_strided_slice %201 {offsets = [0, 96], sizes = [8, 32], strides = [1, 1]} : vector<8x128xf32> to vector<8x32xf32>
    %207 = arith.mulf %204, %173 : vector<8x32xf32>
    %208 = arith.mulf %203, %205 : vector<8x32xf32>
    %209 = arith.addf %207, %208 : vector<8x32xf32>
    %210 = math.tanh %209 : vector<8x32xf32>
    %211 = arith.mulf %206, %210 : vector<8x32xf32>
    %212 = tpu.concatenate %211, %193 in 1 : vector<8x32xf32>, vector<8x32xf32> -> vector<8x64xf32>
    %cst_32 = arith.constant dense<0.000000e+00> : vector<8x128xf32>
    %213 = tpu.matmul %212, %9, %cst_32 {dimension_numbers = #tpu.dot_dimension_numbers<[1], [0], [0], [1], [0, 0, 1, 1], [], []>} : vector<8x64xf32>, vector<64x128xf32>, vector<8x128xf32> -> vector<8x128xf32>
    %214 = arith.addf %213, %12 : vector<8x128xf32>
    %215 = arith.negf %214 : vector<8x128xf32>
    %216 = math.exp %215 : vector<8x128xf32>
    %cst_33 = arith.constant 1.000000e+00 : f32
    %217 = vector.broadcast %cst_33 : f32 to vector<8x128xf32>
    %218 = arith.addf %217, %216 : vector<8x128xf32>
    %219 = arith.divf %217, %218 : vector<8x128xf32>
    %220 = math.tanh %214 : vector<8x128xf32>
    %221 = vector.extract_strided_slice %219 {offsets = [0, 0], sizes = [8, 32], strides = [1, 1]} : vector<8x128xf32> to vector<8x32xf32>
    %222 = vector.extract_strided_slice %219 {offsets = [0, 32], sizes = [8, 32], strides = [1, 1]} : vector<8x128xf32> to vector<8x32xf32>
    %223 = vector.extract_strided_slice %220 {offsets = [0, 64], sizes = [8, 32], strides = [1, 1]} : vector<8x128xf32> to vector<8x32xf32>
    %224 = vector.extract_strided_slice %219 {offsets = [0, 96], sizes = [8, 32], strides = [1, 1]} : vector<8x128xf32> to vector<8x32xf32>
    %225 = arith.mulf %222, %191 : vector<8x32xf32>
    %226 = arith.mulf %221, %223 : vector<8x32xf32>
    %227 = arith.addf %225, %226 : vector<8x32xf32>
    %228 = math.tanh %227 : vector<8x32xf32>
    %229 = arith.mulf %224, %228 : vector<8x32xf32>
    %230 = vector.extract_strided_slice %7 {offsets = [48, 0], sizes = [8, 128], strides = [1, 1]} : vector<64x128xf32> to vector<8x128xf32>
    %cst_34 = arith.constant dense<0.000000e+00> : vector<8x128xf32>
    %231 = tpu.matmul %211, %8, %cst_34 {dimension_numbers = #tpu.dot_dimension_numbers<[1], [0], [0], [1], [0, 0, 1, 1], [], []>} : vector<8x32xf32>, vector<32x128xf32>, vector<8x128xf32> -> vector<8x128xf32>
    %232 = arith.addf %230, %231 : vector<8x128xf32>
    %233 = arith.negf %232 : vector<8x128xf32>
    %234 = math.exp %233 : vector<8x128xf32>
    %cst_35 = arith.constant 1.000000e+00 : f32
    %235 = vector.broadcast %cst_35 : f32 to vector<8x128xf32>
    %236 = arith.addf %235, %234 : vector<8x128xf32>
    %237 = arith.divf %235, %236 : vector<8x128xf32>
    %238 = math.tanh %232 : vector<8x128xf32>
    %239 = vector.extract_strided_slice %237 {offsets = [0, 0], sizes = [8, 32], strides = [1, 1]} : vector<8x128xf32> to vector<8x32xf32>
    %240 = vector.extract_strided_slice %237 {offsets = [0, 32], sizes = [8, 32], strides = [1, 1]} : vector<8x128xf32> to vector<8x32xf32>
    %241 = vector.extract_strided_slice %238 {offsets = [0, 64], sizes = [8, 32], strides = [1, 1]} : vector<8x128xf32> to vector<8x32xf32>
    %242 = vector.extract_strided_slice %237 {offsets = [0, 96], sizes = [8, 32], strides = [1, 1]} : vector<8x128xf32> to vector<8x32xf32>
    %243 = arith.mulf %240, %209 : vector<8x32xf32>
    %244 = arith.mulf %239, %241 : vector<8x32xf32>
    %245 = arith.addf %243, %244 : vector<8x32xf32>
    %246 = math.tanh %245 : vector<8x32xf32>
    %247 = arith.mulf %242, %246 : vector<8x32xf32>
    %248 = tpu.concatenate %247, %229 in 1 : vector<8x32xf32>, vector<8x32xf32> -> vector<8x64xf32>
    %cst_36 = arith.constant dense<0.000000e+00> : vector<8x128xf32>
    %249 = tpu.matmul %248, %9, %cst_36 {dimension_numbers = #tpu.dot_dimension_numbers<[1], [0], [0], [1], [0, 0, 1, 1], [], []>} : vector<8x64xf32>, vector<64x128xf32>, vector<8x128xf32> -> vector<8x128xf32>
    %250 = arith.addf %249, %12 : vector<8x128xf32>
    %251 = arith.negf %250 : vector<8x128xf32>
    %252 = math.exp %251 : vector<8x128xf32>
    %cst_37 = arith.constant 1.000000e+00 : f32
    %253 = vector.broadcast %cst_37 : f32 to vector<8x128xf32>
    %254 = arith.addf %253, %252 : vector<8x128xf32>
    %255 = arith.divf %253, %254 : vector<8x128xf32>
    %256 = math.tanh %250 : vector<8x128xf32>
    %257 = vector.extract_strided_slice %255 {offsets = [0, 0], sizes = [8, 32], strides = [1, 1]} : vector<8x128xf32> to vector<8x32xf32>
    %258 = vector.extract_strided_slice %255 {offsets = [0, 32], sizes = [8, 32], strides = [1, 1]} : vector<8x128xf32> to vector<8x32xf32>
    %259 = vector.extract_strided_slice %256 {offsets = [0, 64], sizes = [8, 32], strides = [1, 1]} : vector<8x128xf32> to vector<8x32xf32>
    %260 = vector.extract_strided_slice %255 {offsets = [0, 96], sizes = [8, 32], strides = [1, 1]} : vector<8x128xf32> to vector<8x32xf32>
    %261 = arith.mulf %258, %227 : vector<8x32xf32>
    %262 = arith.mulf %257, %259 : vector<8x32xf32>
    %263 = arith.addf %261, %262 : vector<8x32xf32>
    %264 = math.tanh %263 : vector<8x32xf32>
    %265 = arith.mulf %260, %264 : vector<8x32xf32>
    %266 = vector.extract_strided_slice %7 {offsets = [56, 0], sizes = [8, 128], strides = [1, 1]} : vector<64x128xf32> to vector<8x128xf32>
    %cst_38 = arith.constant dense<0.000000e+00> : vector<8x128xf32>
    %267 = tpu.matmul %247, %8, %cst_38 {dimension_numbers = #tpu.dot_dimension_numbers<[1], [0], [0], [1], [0, 0, 1, 1], [], []>} : vector<8x32xf32>, vector<32x128xf32>, vector<8x128xf32> -> vector<8x128xf32>
    %268 = arith.addf %266, %267 : vector<8x128xf32>
    %269 = arith.negf %268 : vector<8x128xf32>
    %270 = math.exp %269 : vector<8x128xf32>
    %cst_39 = arith.constant 1.000000e+00 : f32
    %271 = vector.broadcast %cst_39 : f32 to vector<8x128xf32>
    %272 = arith.addf %271, %270 : vector<8x128xf32>
    %273 = arith.divf %271, %272 : vector<8x128xf32>
    %274 = math.tanh %268 : vector<8x128xf32>
    %275 = vector.extract_strided_slice %273 {offsets = [0, 0], sizes = [8, 32], strides = [1, 1]} : vector<8x128xf32> to vector<8x32xf32>
    %276 = vector.extract_strided_slice %273 {offsets = [0, 32], sizes = [8, 32], strides = [1, 1]} : vector<8x128xf32> to vector<8x32xf32>
    %277 = vector.extract_strided_slice %274 {offsets = [0, 64], sizes = [8, 32], strides = [1, 1]} : vector<8x128xf32> to vector<8x32xf32>
    %278 = vector.extract_strided_slice %273 {offsets = [0, 96], sizes = [8, 32], strides = [1, 1]} : vector<8x128xf32> to vector<8x32xf32>
    %279 = arith.mulf %276, %245 : vector<8x32xf32>
    %280 = arith.mulf %275, %277 : vector<8x32xf32>
    %281 = arith.addf %279, %280 : vector<8x32xf32>
    %282 = math.tanh %281 : vector<8x32xf32>
    %283 = arith.mulf %278, %282 : vector<8x32xf32>
    %284 = tpu.concatenate %283, %265 in 1 : vector<8x32xf32>, vector<8x32xf32> -> vector<8x64xf32>
    %cst_40 = arith.constant dense<0.000000e+00> : vector<8x128xf32>
    %285 = tpu.matmul %284, %9, %cst_40 {dimension_numbers = #tpu.dot_dimension_numbers<[1], [0], [0], [1], [0, 0, 1, 1], [], []>} : vector<8x64xf32>, vector<64x128xf32>, vector<8x128xf32> -> vector<8x128xf32>
    %286 = arith.addf %285, %12 : vector<8x128xf32>
    %287 = arith.negf %286 : vector<8x128xf32>
    %288 = math.exp %287 : vector<8x128xf32>
    %cst_41 = arith.constant 1.000000e+00 : f32
    %289 = vector.broadcast %cst_41 : f32 to vector<8x128xf32>
    %290 = arith.addf %289, %288 : vector<8x128xf32>
    %291 = arith.divf %289, %290 : vector<8x128xf32>
    %292 = math.tanh %286 : vector<8x128xf32>
    %293 = vector.extract_strided_slice %291 {offsets = [0, 0], sizes = [8, 32], strides = [1, 1]} : vector<8x128xf32> to vector<8x32xf32>
    %294 = vector.extract_strided_slice %291 {offsets = [0, 32], sizes = [8, 32], strides = [1, 1]} : vector<8x128xf32> to vector<8x32xf32>
    %295 = vector.extract_strided_slice %292 {offsets = [0, 64], sizes = [8, 32], strides = [1, 1]} : vector<8x128xf32> to vector<8x32xf32>
    %296 = vector.extract_strided_slice %291 {offsets = [0, 96], sizes = [8, 32], strides = [1, 1]} : vector<8x128xf32> to vector<8x32xf32>
    %297 = arith.mulf %294, %263 : vector<8x32xf32>
    %298 = arith.mulf %293, %295 : vector<8x32xf32>
    %299 = arith.addf %297, %298 : vector<8x32xf32>
    %300 = math.tanh %299 : vector<8x32xf32>
    %301 = arith.mulf %296, %300 : vector<8x32xf32>
    %c0_42 = arith.constant 0 : index
    %c0_43 = arith.constant 0 : index
    %302 = vector.load %arg5[%c0_42, %c0_43] : memref<32x32xf32, #tpu.memory_space<vmem>>, vector<32x32xf32>
    %cst_44 = arith.constant dense<0.000000e+00> : vector<8x32xf32>
    %303 = tpu.matmul %301, %302, %cst_44 {dimension_numbers = #tpu.dot_dimension_numbers<[1], [0], [0], [1], [0, 0, 1, 1], [], []>} : vector<8x32xf32>, vector<32x32xf32>, vector<8x32xf32> -> vector<8x32xf32>
    %c0_45 = arith.constant 0 : index
    %c0_46 = arith.constant 0 : index
    %304 = vector.load %arg6[%c0_45, %c0_46] : memref<1x32xf32, #tpu.memory_space<vmem>>, vector<1x32xf32>
    %305 = vector.broadcast %304 : vector<1x32xf32> to vector<8x32xf32>
    %306 = arith.addf %303, %305 : vector<8x32xf32>
    %c0_47 = arith.constant 0 : index
    %c0_48 = arith.constant 0 : index
    %307 = vector.load %arg7[%c0_47, %c0_48] : memref<8x32xf32, #tpu.memory_space<vmem>>, vector<8x32xf32>
    tpu.vector_store %arg7[%c0_47, %c0_48], %306 {strides = array<i32>} : memref<8x32xf32, #tpu.memory_space<vmem>>, vector<8x32xf32>,
    return
  }
}

</mosaic_0001>

<llo_original>
// kernel: shakespeare_forward.1
$region0: #{shakespeare_forward.1}
  #allocation0 [shape = 'u32[]', space=smem, size = 0x4, offset = 0x4, fixed_abs, tag = 'smem constant byte address 0x4 - core index']
  #allocation1 [shape = 'u32[72,128]{1,0:T(1,128)}', space=vmem, size = 0x9000, scoped, tag = 'internal scratch']
  %s0 = inlined_call_operand.vmem [shape: s32[64,1], index: 0, kind: input, shape index: {}]
  %s1 = inlined_call_operand.vmem [shape: f32[32,128], index: 1, kind: input, shape index: {}]
  %s2 = inlined_call_operand.vmem [shape: f32[32,128], index: 2, kind: input, shape index: {}]
  %s3 = inlined_call_operand.vmem [shape: f32[64,128], index: 3, kind: input, shape index: {}]
  %s4 = inlined_call_operand.vmem [shape: f32[1,128], index: 4, kind: input, shape index: {}]
  %s5 = inlined_call_operand.vmem [shape: f32[32,32], index: 5, kind: input, shape index: {}]
  %s6 = inlined_call_operand.vmem [shape: f32[1,32], index: 6, kind: input, shape index: {}]
  %s7 = inlined_call_operand.vmem [shape: f32[8,32], index: 7, kind: output, shape index: {}]
  %s8 = sld [smem:[#allocation0]]
  $region38: #{shakespeare_forward.1} parent=0
    _
  %s10 = ssub.s32 1, %s8
  %s11 = scalar_select 0, %s10, %s8
  // Predicated region
  $region2: #{shakespeare_forward.1} parent=0 // pred_check
    _
  $region3: #{shakespeare_forward.1} parent=0 // pred_check_branch
    %13 = sbr.rel (0) target = $region5
  $region4: #{shakespeare_forward.1} parent=0 // pred_region
    _
  $region5: #{shakespeare_forward.1} parent=0 // pred_fallthru
    _
  // Predicated region
  $region6: #{shakespeare_forward.1} parent=0 // pred_check
    _
  $region7: #{shakespeare_forward.1} parent=0 // pred_check_branch
    %15 = sbr.rel (0) target = $region9
  $region8: #{shakespeare_forward.1} parent=0 // pred_region
    _
  $region9: #{shakespeare_forward.1} parent=0 // pred_fallthru
    _
  // Predicated region
  $region10: #{shakespeare_forward.1} parent=0 // pred_check
    _
  $region11: #{shakespeare_forward.1} parent=0 // pred_check_branch
    %17 = sbr.rel (0) target = $region13
  $region12: #{shakespeare_forward.1} parent=0 // pred_region
    _
  $region13: #{shakespeare_forward.1} parent=0 // pred_fallthru
    _
  // Predicated region
  $region14: #{shakespeare_forward.1} parent=0 // pred_check
    _
  $region15: #{shakespeare_forward.1} parent=0 // pred_check_branch
    %19 = sbr.rel (0) target = $region17
  $region16: #{shakespeare_forward.1} parent=0 // pred_region
    _
  $region17: #{shakespeare_forward.1} parent=0 // pred_fallthru
    _
  // Predicated region
  $region18: #{shakespeare_forward.1} parent=0 // pred_check
    _
  $region19: #{shakespeare_forward.1} parent=0 // pred_check_branch
    %21 = sbr.rel (0) target = $region21
  $region20: #{shakespeare_forward.1} parent=0 // pred_region
    _
  $region21: #{shakespeare_forward.1} parent=0 // pred_fallthru
    _
  // Predicated region
  $region22: #{shakespeare_forward.1} parent=0 // pred_check
    _
  $region23: #{shakespeare_forward.1} parent=0 // pred_check_branch
    %23 = sbr.rel (0) target = $region25
  $region24: #{shakespeare_forward.1} parent=0 // pred_region
    _
  $region25: #{shakespeare_forward.1} parent=0 // pred_fallthru
    _
  // Predicated region
  $region26: #{shakespeare_forward.1} parent=0 // pred_check
    _
  $region27: #{shakespeare_forward.1} parent=0 // pred_check_branch
    %25 = sbr.rel (0) target = $region29
  $region28: #{shakespeare_forward.1} parent=0 // pred_region
    _
  $region29: #{shakespeare_forward.1} parent=0 // pred_fallthru
    _
  %v26 = vld [vmem:[%s0] sm:$0xff]
  %v27 = vld [vmem:[%s0 + $0x8] sm:$0xff]
  %v28 = vld [vmem:[%s0 + $0x10] sm:$0xff]
  %v29 = vld [vmem:[%s0 + $0x18] sm:$0xff]
  %v30 = vld [vmem:[%s0 + $0x20] sm:$0xff]
  %v31 = vld [vmem:[%s0 + $0x28] sm:$0xff]
  %v32 = vld [vmem:[%s0 + $0x30] sm:$0xff]
  %v33 = vld [vmem:[%s0 + $0x38] sm:$0xff]
  %v34 = vlaneseq
  %v35 = vand.u32 %v34, 127
  %36 = vset.pattern.permute.xlu0 0
  %37 = vperm.xlu0 %36, %v26
  %v38 = vpop.permute.xlu0 %37
  %39 = vset.pattern.permute.xlu0 0
  %40 = vperm.xlu0 %39, %v27
  %v41 = vpop.permute.xlu0 %40
  %42 = vset.pattern.permute.xlu0 0
  %43 = vperm.xlu0 %42, %v28
  %v44 = vpop.permute.xlu0 %43
  %45 = vset.pattern.permute.xlu0 0
  %46 = vperm.xlu0 %45, %v29
  %v47 = vpop.permute.xlu0 %46
  %48 = vset.pattern.permute.xlu0 0
  %49 = vperm.xlu0 %48, %v30
  %v50 = vpop.permute.xlu0 %49
  %51 = vset.pattern.permute.xlu0 0
  %52 = vperm.xlu0 %51, %v31
  %v53 = vpop.permute.xlu0 %52
  %54 = vset.pattern.permute.xlu0 0
  %55 = vperm.xlu0 %54, %v32
  %v56 = vpop.permute.xlu0 %55
  %57 = vset.pattern.permute.xlu0 0
  %58 = vperm.xlu0 %57, %v33
  %v59 = vpop.permute.xlu0 %58
  %vm60 = vcmp.eq.s32.totalorder %v38, %v35
  %vm61 = vcmp.eq.s32.totalorder %v41, %v35
  %vm62 = vcmp.eq.s32.totalorder %v44, %v35
  %vm63 = vcmp.eq.s32.totalorder %v47, %v35
  %vm64 = vcmp.eq.s32.totalorder %v50, %v35
  %vm65 = vcmp.eq.s32.totalorder %v53, %v35
  %vm66 = vcmp.eq.s32.totalorder %v56, %v35
  %vm67 = vcmp.eq.s32.totalorder %v59, %v35
  %v68 = vsel %vm60, 1, 0
  %v69 = vsel %vm61, 1, 0
  %v70 = vsel %vm62, 1, 0
  %v71 = vsel %vm63, 1, 0
  %v72 = vsel %vm64, 1, 0
  %v73 = vsel %vm65, 1, 0
  %v74 = vsel %vm66, 1, 0
  %v75 = vsel %vm67, 1, 0
  %v76 = vcvt.s32.f32 %v68
  %v77 = vcvt.s32.f32 %v69
  %v78 = vcvt.s32.f32 %v70
  %v79 = vcvt.s32.f32 %v71
  %v80 = vcvt.s32.f32 %v72
  %v81 = vcvt.s32.f32 %v73
  %v82 = vcvt.s32.f32 %v74
  %v83 = vcvt.s32.f32 %v75
  %v84 = vld [vmem:[%s1] sm:$0xff]
  %v85 = vld [vmem:[%s1 + $0x8] sm:$0xff]
  %v86 = vld [vmem:[%s1 + $0x10] sm:$0xff]
  %v87 = vld [vmem:[%s1 + $0x18] sm:$0xff]
  %vm88 = vcmask 261120
  %v90 = vsel %vm88, %v76, 0
  %v93 = vsel %vm88, %v77, 0
  %v96 = vsel %vm88, %v78, 0
  %v99 = vsel %vm88, %v79, 0
  %v102 = vsel %vm88, %v80, 0
  %v105 = vsel %vm88, %v81, 0
  %v108 = vsel %vm88, %v82, 0
  %v111 = vsel %vm88, %v83, 0
  %113 = vmatpush.msra.mxu0 0.0
  %114 = vmatpush.msra.mxu0 0.0
  %115 = vmatpush.msra.mxu0 0.0
  %116 = vmatpush.msra.mxu0 0.0
  %117 = vmatpush.msra.mxu0 0.0
  %118 = vmatpush.msra.mxu0 0.0
  %119 = vmatpush.msra.mxu0 0.0
  %120 = vmatpush.msra.mxu0 0.0
  %121 = vmatpush.msra.mxu0 0.0
  %122 = vmatpush.msra.mxu0 0.0
  %123 = vmatpush.msra.mxu0 0.0
  %124 = vmatpush.msra.mxu0 0.0
  %125 = vmatpush.msra.mxu0 %v87
  %126 = vmatpush.msra.mxu0 %v86
  %127 = vmatpush.msra.mxu0 %v85
  %128 = vmatpush.msra.mxu0 %v84
  %129 = vmatmul.f32.gmra.mxu0 %v90
  %v130 = vpop.f32.mrf.mxu0
  %v131 = vadd.f32 0.0, %v130
  %132 = vmatmul.f32.gmra.mxu0 %v93
  %v133 = vpop.f32.mrf.mxu0
  %v134 = vadd.f32 0.0, %v133
  %135 = vmatmul.f32.gmra.mxu0 %v96
  %v136 = vpop.f32.mrf.mxu0
  %v137 = vadd.f32 0.0, %v136
  %138 = vmatmul.f32.gmra.mxu0 %v99
  %v139 = vpop.f32.mrf.mxu0
  %v140 = vadd.f32 0.0, %v139
  %141 = vmatmul.f32.gmra.mxu0 %v102
  %v142 = vpop.f32.mrf.mxu0
  %v143 = vadd.f32 0.0, %v142
  %144 = vmatmul.f32.gmra.mxu0 %v105
  %v145 = vpop.f32.mrf.mxu0
  %v146 = vadd.f32 0.0, %v145
  %147 = vmatmul.f32.gmra.mxu0 %v108
  %v148 = vpop.f32.mrf.mxu0
  %v149 = vadd.f32 0.0, %v148
  %150 = vmatmul.f32.gmra.mxu0 %v111
  %v151 = vpop.f32.mrf.mxu0
  %v152 = vadd.f32 0.0, %v151
  %153 = vdwg.mxu0
  %v154 = vld [vmem:[%s2] sm:$0xff]
  %v155 = vld [vmem:[%s2 + $0x8] sm:$0xff]
  %v156 = vld [vmem:[%s2 + $0x10] sm:$0xff]
  %v157 = vld [vmem:[%s2 + $0x18] sm:$0xff]
  %v158 = vld [vmem:[%s3] sm:$0xff]
  %v159 = vld [vmem:[%s3 + $0x8] sm:$0xff]
  %v160 = vld [vmem:[%s3 + $0x10] sm:$0xff]
  %v161 = vld [vmem:[%s3 + $0x18] sm:$0xff]
  %v162 = vld [vmem:[%s3 + $0x20] sm:$0xff]
  %v163 = vld [vmem:[%s3 + $0x28] sm:$0xff]
  %v164 = vld [vmem:[%s3 + $0x30] sm:$0xff]
  %v165 = vld [vmem:[%s3 + $0x38] sm:$0xff]
  %v166 = vld [vmem:[%s4] sm:$0x1]
  %v168 = vperm.slane %v166, 0
  %v171 = vsel %vm88, 0.0, 0
  %173 = vmatpush.msra.mxu0 0.0
  %174 = vmatpush.msra.mxu0 0.0
  %175 = vmatpush.msra.mxu0 0.0
  %176 = vmatpush.msra.mxu0 0.0
  %177 = vmatpush.msra.mxu0 0.0
  %178 = vmatpush.msra.mxu0 0.0
  %179 = vmatpush.msra.mxu0 0.0
  %180 = vmatpush.msra.mxu0 0.0
  %181 = vmatpush.msra.mxu0 0.0
  %182 = vmatpush.msra.mxu0 0.0
  %183 = vmatpush.msra.mxu0 0.0
  %184 = vmatpush.msra.mxu0 0.0
  %185 = vmatpush.msra.mxu0 %v157
  %186 = vmatpush.msra.mxu0 %v156
  %187 = vmatpush.msra.mxu0 %v155
  %188 = vmatpush.msra.mxu0 %v154
  %189 = vmatmul.f32.gmra.mxu0 %v171
  %v190 = vpop.f32.mrf.mxu0
  %v191 = vadd.f32 0.0, %v190
  %192 = vdwg.mxu0
  %v193 = vadd.f32 %v131, %v191
  %v194 = vxor.u32 %v193, 2147483648
  %v195 = vmul.f32 %v194, 1.442695
  %v196 = vpow.pop %v195
  %v197 = vadd.f32 %v196, 1.0
  %v198 = vrcp.pop %v197
  %v199 = vmul.f32 %v197, %v198
  %v200 = vsub.f32 1.0, %v199
  %v201 = vmul.f32 %v198, %v200
  %v202 = vadd.f32 %v198, %v201
  %vm203 = vweird.f32 %v197
  %vm204 = vweird.f32 %v198
  %vm205 = vmor %vm203, %vm204
  %v206 = vsel %vm205, %v198, %v202
  %v207 = vand.u32 2147483647, %v197
  %vm208 = vcmp.eq.f32.partialorder %v207, 8.507059e+37
  %v209 = vand.u32 %v197, 2147483648
  %v210 = vor.u32 1.1754944e-38, %v209
  %v211 = vsel %vm208, %v210, %v206
  %v212 = vmul.f32 1.0, %v211
  %v213 = vtanh.pop %v193
  %v214 = vmul.f32 %v212, 0.0
  %216 = vrot.lane.b32.xlu0 %v213, 64
  %v217 = vpop.permute.xlu0 %216
  %v219 = vmul.f32 %v212, %v217
  %221 = vrot.lane.b32.xlu0 %v219, 32
  %v222 = vpop.permute.xlu0 %221
  %v224 = vadd.f32 %v214, %v222
  %v225 = vtanh.pop %v224
  %227 = vrot.lane.b32.xlu0 %v225, 64
  %v228 = vpop.permute.xlu0 %227
  %v230 = vmul.f32 %v212, %v228
  %232 = vrot.lane.b32.xlu0 %v230, 32
  %v233 = vpop.permute.xlu0 %232
  %v235 = vsel %vm88, %v233, 0.0
  %vm236 = vcmask 523264
  %v238 = vsel %vm236, %v235, 0
  %240 = vmatpush.msra.mxu0 0.0
  %241 = vmatpush.msra.mxu0 0.0
  %242 = vmatpush.msra.mxu0 0.0
  %243 = vmatpush.msra.mxu0 0.0
  %244 = vmatpush.msra.mxu0 0.0
  %245 = vmatpush.msra.mxu0 0.0
  %246 = vmatpush.msra.mxu0 0.0
  %247 = vmatpush.msra.mxu0 0.0
  %248 = vmatpush.msra.mxu0 %v165
  %249 = vmatpush.msra.mxu0 %v164
  %250 = vmatpush.msra.mxu0 %v163
  %251 = vmatpush.msra.mxu0 %v162
  %252 = vmatpush.msra.mxu0 %v161
  %253 = vmatpush.msra.mxu0 %v160
  %254 = vmatpush.msra.mxu0 %v159
  %255 = vmatpush.msra.mxu0 %v158
  %256 = vmatmul.f32.gmra.mxu0 %v238
  %v257 = vpop.f32.mrf.mxu0
  %v258 = vadd.f32 %v168, %v257
  %259 = vdwg.mxu0
  %v260 = vxor.u32 %v258, 2147483648
  %v261 = vmul.f32 %v260, 1.442695
  %v262 = vpow.pop %v261
  %v263 = vadd.f32 %v262, 1.0
  %v264 = vrcp.pop %v263
  %v265 = vmul.f32 %v263, %v264
  %v266 = vsub.f32 1.0, %v265
  %v267 = vmul.f32 %v264, %v266
  %v268 = vadd.f32 %v264, %v267
  %vm269 = vweird.f32 %v263
  %vm270 = vweird.f32 %v264
  %vm271 = vmor %vm269, %vm270
  %v272 = vsel %vm271, %v264, %v268
  %v273 = vand.u32 2147483647, %v263
  %vm274 = vcmp.eq.f32.partialorder %v273, 8.507059e+37
  %v275 = vand.u32 %v263, 2147483648
  %v276 = vor.u32 1.1754944e-38, %v275
  %v277 = vsel %vm274, %v276, %v272
  %v278 = vmul.f32 1.0, %v277
  %v279 = vtanh.pop %v258
  %v280 = vmul.f32 %v278, 0.0
  %282 = vrot.lane.b32.xlu0 %v279, 64
  %v283 = vpop.permute.xlu0 %282
  %v285 = vmul.f32 %v278, %v283
  %287 = vrot.lane.b32.xlu0 %v285, 32
  %v288 = vpop.permute.xlu0 %287
  %v290 = vadd.f32 %v280, %v288
  %v291 = vtanh.pop %v290
  %293 = vrot.lane.b32.xlu0 %v291, 64
  %v294 = vpop.permute.xlu0 %293
  %v296 = vmul.f32 %v278, %v294
  %v297 = vsel %vm88, %v233, 0
  %299 = vmatpush.msra.mxu0 0.0
  %300 = vmatpush.msra.mxu0 0.0
  %301 = vmatpush.msra.mxu0 0.0
  %302 = vmatpush.msra.mxu0 0.0
  %303 = vmatpush.msra.mxu0 0.0
  %304 = vmatpush.msra.mxu0 0.0
  %305 = vmatpush.msra.mxu0 0.0
  %306 = vmatpush.msra.mxu0 0.0
  %307 = vmatpush.msra.mxu0 0.0
  %308 = vmatpush.msra.mxu0 0.0
  %309 = vmatpush.msra.mxu0 0.0
  %310 = vmatpush.msra.mxu0 0.0
  %311 = vmatpush.msra.mxu0 %v157
  %312 = vmatpush.msra.mxu0 %v156
  %313 = vmatpush.msra.mxu0 %v155
  %314 = vmatpush.msra.mxu0 %v154
  %315 = vmatmul.f32.gmra.mxu0 %v297
  %v316 = vpop.f32.mrf.mxu0
  %v317 = vadd.f32 0.0, %v316
  %318 = vdwg.mxu0
  %v319 = vadd.f32 %v134, %v317
  %v320 = vxor.u32 %v319, 2147483648
  %v321 = vmul.f32 %v320, 1.442695
  %v322 = vpow.pop %v321
  %v323 = vadd.f32 %v322, 1.0
  %v324 = vrcp.pop %v323
  %v325 = vmul.f32 %v323, %v324
  %v326 = vsub.f32 1.0, %v325
  %v327 = vmul.f32 %v324, %v326
  %v328 = vadd.f32 %v324, %v327
  %vm329 = vweird.f32 %v323
  %vm330 = vweird.f32 %v324
  %vm331 = vmor %vm329, %vm330
  %v332 = vsel %vm331, %v324, %v328
  %v333 = vand.u32 2147483647, %v323
  %vm334 = vcmp.eq.f32.partialorder %v333, 8.507059e+37
  %v335 = vand.u32 %v323, 2147483648
  %v336 = vor.u32 1.1754944e-38, %v335
  %v337 = vsel %vm334, %v336, %v332
  %v338 = vmul.f32 1.0, %v337
  %v339 = vtanh.pop %v319
  %v340 = vmul.f32 %v338, %v224
  %342 = vrot.lane.b32.xlu0 %v339, 64
  %v343 = vpop.permute.xlu0 %342
  %v345 = vmul.f32 %v338, %v343
  %347 = vrot.lane.b32.xlu0 %v345, 32
  %v348 = vpop.permute.xlu0 %347
  %v350 = vadd.f32 %v340, %v348
  %v351 = vtanh.pop %v350
  %353 = vrot.lane.b32.xlu0 %v351, 64
  %v354 = vpop.permute.xlu0 %353
  %v356 = vmul.f32 %v338, %v354
  %358 = vrot.lane.b32.xlu0 %v356, 32
  %v359 = vpop.permute.xlu0 %358
  %362 = vrot.lane.b32.xlu0 %v296, 64
  %v363 = vpop.permute.xlu0 %362
  %v365 = vsel %vm88, %v359, %v363
  %v367 = vsel %vm236, %v365, 0
  %369 = vmatpush.msra.mxu0 0.0
  %370 = vmatpush.msra.mxu0 0.0
  %371 = vmatpush.msra.mxu0 0.0
  %372 = vmatpush.msra.mxu0 0.0
  %373 = vmatpush.msra.mxu0 0.0
  %374 = vmatpush.msra.mxu0 0.0
  %375 = vmatpush.msra.mxu0 0.0
  %376 = vmatpush.msra.mxu0 0.0
  %377 = vmatpush.msra.mxu0 %v165
  %378 = vmatpush.msra.mxu0 %v164
  %379 = vmatpush.msra.mxu0 %v163
  %380 = vmatpush.msra.mxu0 %v162
  %381 = vmatpush.msra.mxu0 %v161
  %382 = vmatpush.msra.mxu0 %v160
  %383 = vmatpush.msra.mxu0 %v159
  %384 = vmatpush.msra.mxu0 %v158
  %385 = vmatmul.f32.gmra.mxu0 %v367
  %v386 = vpop.f32.mrf.mxu0
  %v387 = vadd.f32 %v168, %v386
  %388 = vdwg.mxu0
  %v389 = vxor.u32 %v387, 2147483648
  %v390 = vmul.f32 %v389, 1.442695
  %v391 = vpow.pop %v390
  %v392 = vadd.f32 %v391, 1.0
  %v393 = vrcp.pop %v392
  %v394 = vmul.f32 %v392, %v393
  %v395 = vsub.f32 1.0, %v394
  %v396 = vmul.f32 %v393, %v395
  %v397 = vadd.f32 %v393, %v396
  %vm398 = vweird.f32 %v392
  %vm399 = vweird.f32 %v393
  %vm400 = vmor %vm398, %vm399
  %v401 = vsel %vm400, %v393, %v397
  %v402 = vand.u32 2147483647, %v392
  %vm403 = vcmp.eq.f32.partialorder %v402, 8.507059e+37
  %v404 = vand.u32 %v392, 2147483648
  %v405 = vor.u32 1.1754944e-38, %v404
  %v406 = vsel %vm403, %v405, %v401
  %v407 = vmul.f32 1.0, %v406
  %v408 = vtanh.pop %v387
  %v409 = vmul.f32 %v407, %v290
  %411 = vrot.lane.b32.xlu0 %v408, 64
  %v412 = vpop.permute.xlu0 %411
  %v414 = vmul.f32 %v407, %v412
  %416 = vrot.lane.b32.xlu0 %v414, 32
  %v417 = vpop.permute.xlu0 %416
  %v419 = vadd.f32 %v409, %v417
  %v420 = vtanh.pop %v419
  %422 = vrot.lane.b32.xlu0 %v420, 64
  %v423 = vpop.permute.xlu0 %422
  %v425 = vmul.f32 %v407, %v423
  %v426 = vsel %vm88, %v359, 0
  %428 = vmatpush.msra.mxu0 0.0
  %429 = vmatpush.msra.mxu0 0.0
  %430 = vmatpush.msra.mxu0 0.0
  %431 = vmatpush.msra.mxu0 0.0
  %432 = vmatpush.msra.mxu0 0.0
  %433 = vmatpush.msra.mxu0 0.0
  %434 = vmatpush.msra.mxu0 0.0
  %435 = vmatpush.msra.mxu0 0.0
  %436 = vmatpush.msra.mxu0 0.0
  %437 = vmatpush.msra.mxu0 0.0
  %438 = vmatpush.msra.mxu0 0.0
  %439 = vmatpush.msra.mxu0 0.0
  %440 = vmatpush.msra.mxu0 %v157
  %441 = vmatpush.msra.mxu0 %v156
  %442 = vmatpush.msra.mxu0 %v155
  %443 = vmatpush.msra.mxu0 %v154
  %444 = vmatmul.f32.gmra.mxu0 %v426
  %v445 = vpop.f32.mrf.mxu0
  %v446 = vadd.f32 0.0, %v445
  %447 = vdwg.mxu0
  %v448 = vadd.f32 %v137, %v446
  %v449 = vxor.u32 %v448, 2147483648
  %v450 = vmul.f32 %v449, 1.442695
  %v451 = vpow.pop %v450
  %v452 = vadd.f32 %v451, 1.0
  %v453 = vrcp.pop %v452
  %v454 = vmul.f32 %v452, %v453
  %v455 = vsub.f32 1.0, %v454
  %v456 = vmul.f32 %v453, %v455
  %v457 = vadd.f32 %v453, %v456
  %vm458 = vweird.f32 %v452
  %vm459 = vweird.f32 %v453
  %vm460 = vmor %vm458, %vm459
  %v461 = vsel %vm460, %v453, %v457
  %v462 = vand.u32 2147483647, %v452
  %vm463 = vcmp.eq.f32.partialorder %v462, 8.507059e+37
  %v464 = vand.u32 %v452, 2147483648
  %v465 = vor.u32 1.1754944e-38, %v464
  %v466 = vsel %vm463, %v465, %v461
  %v467 = vmul.f32 1.0, %v466
  %v468 = vtanh.pop %v448
  %v469 = vmul.f32 %v467, %v350
  %471 = vrot.lane.b32.xlu0 %v468, 64
  %v472 = vpop.permute.xlu0 %471
  %v474 = vmul.f32 %v467, %v472
  %476 = vrot.lane.b32.xlu0 %v474, 32
  %v477 = vpop.permute.xlu0 %476
  %v479 = vadd.f32 %v469, %v477
  %v480 = vtanh.pop %v479
  %482 = vrot.lane.b32.xlu0 %v480, 64
  %v483 = vpop.permute.xlu0 %482
  %v485 = vmul.f32 %v467, %v483
  %487 = vrot.lane.b32.xlu0 %v485, 32
  %v488 = vpop.permute.xlu0 %487
  %491 = vrot.lane.b32.xlu0 %v425, 64
  %v492 = vpop.permute.xlu0 %491
  %v494 = vsel %vm88, %v488, %v492
  %v496 = vsel %vm236, %v494, 0
  %498 = vmatpush.msra.mxu0 0.0
  %499 = vmatpush.msra.mxu0 0.0
  %500 = vmatpush.msra.mxu0 0.0
  %501 = vmatpush.msra.mxu0 0.0
  %502 = vmatpush.msra.mxu0 0.0
  %503 = vmatpush.msra.mxu0 0.0
  %504 = vmatpush.msra.mxu0 0.0
  %505 = vmatpush.msra.mxu0 0.0
  %506 = vmatpush.msra.mxu0 %v165
  %507 = vmatpush.msra.mxu0 %v164
  %508 = vmatpush.msra.mxu0 %v163
  %509 = vmatpush.msra.mxu0 %v162
  %510 = vmatpush.msra.mxu0 %v161
  %511 = vmatpush.msra.mxu0 %v160
  %512 = vmatpush.msra.mxu0 %v159
  %513 = vmatpush.msra.mxu0 %v158
  %514 = vmatmul.f32.gmra.mxu0 %v496
  %v515 = vpop.f32.mrf.mxu0
  %v516 = vadd.f32 %v168, %v515
  %517 = vdwg.mxu0
  %v518 = vxor.u32 %v516, 2147483648
  %v519 = vmul.f32 %v518, 1.442695
  %v520 = vpow.pop %v519
  %v521 = vadd.f32 %v520, 1.0
  %v522 = vrcp.pop %v521
  %v523 = vmul.f32 %v521, %v522
  %v524 = vsub.f32 1.0, %v523
  %v525 = vmul.f32 %v522, %v524
  %v526 = vadd.f32 %v522, %v525
  %vm527 = vweird.f32 %v521
  %vm528 = vweird.f32 %v522
  %vm529 = vmor %vm527, %vm528
  %v530 = vsel %vm529, %v522, %v526
  %v531 = vand.u32 2147483647, %v521
  %vm532 = vcmp.eq.f32.partialorder %v531, 8.507059e+37
  %v533 = vand.u32 %v521, 2147483648
  %v534 = vor.u32 1.1754944e-38, %v533
  %v535 = vsel %vm532, %v534, %v530
  %v536 = vmul.f32 1.0, %v535
  %v537 = vtanh.pop %v516
  %v538 = vmul.f32 %v536, %v419
  %540 = vrot.lane.b32.xlu0 %v537, 64
  %v541 = vpop.permute.xlu0 %540
  %v543 = vmul.f32 %v536, %v541
  %545 = vrot.lane.b32.xlu0 %v543, 32
  %v546 = vpop.permute.xlu0 %545
  %v548 = vadd.f32 %v538, %v546
  %v549 = vtanh.pop %v548
  %551 = vrot.lane.b32.xlu0 %v549, 64
  %v552 = vpop.permute.xlu0 %551
  %v554 = vmul.f32 %v536, %v552
  %v555 = vsel %vm88, %v488, 0
  %557 = vmatpush.msra.mxu0 0.0
  %558 = vmatpush.msra.mxu0 0.0
  %559 = vmatpush.msra.mxu0 0.0
  %560 = vmatpush.msra.mxu0 0.0
  %561 = vmatpush.msra.mxu0 0.0
  %562 = vmatpush.msra.mxu0 0.0
  %563 = vmatpush.msra.mxu0 0.0
  %564 = vmatpush.msra.mxu0 0.0
  %565 = vmatpush.msra.mxu0 0.0
  %566 = vmatpush.msra.mxu0 0.0
  %567 = vmatpush.msra.mxu0 0.0
  %568 = vmatpush.msra.mxu0 0.0
  %569 = vmatpush.msra.mxu0 %v157
  %570 = vmatpush.msra.mxu0 %v156
  %571 = vmatpush.msra.mxu0 %v155
  %572 = vmatpush.msra.mxu0 %v154
  %573 = vmatmul.f32.gmra.mxu0 %v555
  %v574 = vpop.f32.mrf.mxu0
  %v575 = vadd.f32 0.0, %v574
  %576 = vdwg.mxu0
  %v577 = vadd.f32 %v140, %v575
  %v578 = vxor.u32 %v577, 2147483648
  %v579 = vmul.f32 %v578, 1.442695
  %v580 = vpow.pop %v579
  %v581 = vadd.f32 %v580, 1.0
  %v582 = vrcp.pop %v581
  %v583 = vmul.f32 %v581, %v582
  %v584 = vsub.f32 1.0, %v583
  %v585 = vmul.f32 %v582, %v584
  %v586 = vadd.f32 %v582, %v585
  %vm587 = vweird.f32 %v581
  %vm588 = vweird.f32 %v582
  %vm589 = vmor %vm587, %vm588
  %v590 = vsel %vm589, %v582, %v586
  %v591 = vand.u32 2147483647, %v581
  %vm592 = vcmp.eq.f32.partialorder %v591, 8.507059e+37
  %v593 = vand.u32 %v581, 2147483648
  %v594 = vor.u32 1.1754944e-38, %v593
  %v595 = vsel %vm592, %v594, %v590
  %v596 = vmul.f32 1.0, %v595
  %v597 = vtanh.pop %v577
  %v598 = vmul.f32 %v596, %v479
  %600 = vrot.lane.b32.xlu0 %v597, 64
  %v601 = vpop.permute.xlu0 %600
  %v603 = vmul.f32 %v596, %v601
  %605 = vrot.lane.b32.xlu0 %v603, 32
  %v606 = vpop.permute.xlu0 %605
  %v608 = vadd.f32 %v598, %v606
  %v609 = vtanh.pop %v608
  %611 = vrot.lane.b32.xlu0 %v609, 64
  %v612 = vpop.permute.xlu0 %611
  %v614 = vmul.f32 %v596, %v612
  %616 = vrot.lane.b32.xlu0 %v614, 32
  %v617 = vpop.permute.xlu0 %616
  %620 = vrot.lane.b32.xlu0 %v554, 64
  %v621 = vpop.permute.xlu0 %620
  %v623 = vsel %vm88, %v617, %v621
  %v625 = vsel %vm236, %v623, 0
  %627 = vmatpush.msra.mxu0 0.0
  %628 = vmatpush.msra.mxu0 0.0
  %629 = vmatpush.msra.mxu0 0.0
  %630 = vmatpush.msra.mxu0 0.0
  %631 = vmatpush.msra.mxu0 0.0
  %632 = vmatpush.msra.mxu0 0.0
  %633 = vmatpush.msra.mxu0 0.0
  %634 = vmatpush.msra.mxu0 0.0
  %635 = vmatpush.msra.mxu0 %v165
  %636 = vmatpush.msra.mxu0 %v164
  %637 = vmatpush.msra.mxu0 %v163
  %638 = vmatpush.msra.mxu0 %v162
  %639 = vmatpush.msra.mxu0 %v161
  %640 = vmatpush.msra.mxu0 %v160
  %641 = vmatpush.msra.mxu0 %v159
  %642 = vmatpush.msra.mxu0 %v158
  %643 = vmatmul.f32.gmra.mxu0 %v625
  %v644 = vpop.f32.mrf.mxu0
  %v645 = vadd.f32 %v168, %v644
  %646 = vdwg.mxu0
  %v647 = vxor.u32 %v645, 2147483648
  %v648 = vmul.f32 %v647, 1.442695
  %v649 = vpow.pop %v648
  %v650 = vadd.f32 %v649, 1.0
  %v651 = vrcp.pop %v650
  %v652 = vmul.f32 %v650, %v651
  %v653 = vsub.f32 1.0, %v652
  %v654 = vmul.f32 %v651, %v653
  %v655 = vadd.f32 %v651, %v654
  %vm656 = vweird.f32 %v650
  %vm657 = vweird.f32 %v651
  %vm658 = vmor %vm656, %vm657
  %v659 = vsel %vm658, %v651, %v655
  %v660 = vand.u32 2147483647, %v650
  %vm661 = vcmp.eq.f32.partialorder %v660, 8.507059e+37
  %v662 = vand.u32 %v650, 2147483648
  %v663 = vor.u32 1.1754944e-38, %v662
  %v664 = vsel %vm661, %v663, %v659
  %v665 = vmul.f32 1.0, %v664
  %v666 = vtanh.pop %v645
  %v667 = vmul.f32 %v665, %v548
  %669 = vrot.lane.b32.xlu0 %v666, 64
  %v670 = vpop.permute.xlu0 %669
  %v672 = vmul.f32 %v665, %v670
  %674 = vrot.lane.b32.xlu0 %v672, 32
  %v675 = vpop.permute.xlu0 %674
  %v677 = vadd.f32 %v667, %v675
  %v678 = vtanh.pop %v677
  %680 = vrot.lane.b32.xlu0 %v678, 64
  %v681 = vpop.permute.xlu0 %680
  %v683 = vmul.f32 %v665, %v681
  %v684 = vsel %vm88, %v617, 0
  %686 = vmatpush.msra.mxu0 0.0
  %687 = vmatpush.msra.mxu0 0.0
  %688 = vmatpush.msra.mxu0 0.0
  %689 = vmatpush.msra.mxu0 0.0
  %690 = vmatpush.msra.mxu0 0.0
  %691 = vmatpush.msra.mxu0 0.0
  %692 = vmatpush.msra.mxu0 0.0
  %693 = vmatpush.msra.mxu0 0.0
  %694 = vmatpush.msra.mxu0 0.0
  %695 = vmatpush.msra.mxu0 0.0
  %696 = vmatpush.msra.mxu0 0.0
  %697 = vmatpush.msra.mxu0 0.0
  %698 = vmatpush.msra.mxu0 %v157
  %699 = vmatpush.msra.mxu0 %v156
  %700 = vmatpush.msra.mxu0 %v155
  %701 = vmatpush.msra.mxu0 %v154
  %702 = vmatmul.f32.gmra.mxu0 %v684
  %v703 = vpop.f32.mrf.mxu0
  %v704 = vadd.f32 0.0, %v703
  %705 = vdwg.mxu0
  %v706 = vadd.f32 %v143, %v704
  %v707 = vxor.u32 %v706, 2147483648
  %v708 = vmul.f32 %v707, 1.442695
  %v709 = vpow.pop %v708
  %v710 = vadd.f32 %v709, 1.0
  %v711 = vrcp.pop %v710
  %v712 = vmul.f32 %v710, %v711
  %v713 = vsub.f32 1.0, %v712
  %v714 = vmul.f32 %v711, %v713
  %v715 = vadd.f32 %v711, %v714
  %vm716 = vweird.f32 %v710
  %vm717 = vweird.f32 %v711
  %vm718 = vmor %vm716, %vm717
  %v719 = vsel %vm718, %v711, %v715
  %v720 = vand.u32 2147483647, %v710
  %vm721 = vcmp.eq.f32.partialorder %v720, 8.507059e+37
  %v722 = vand.u32 %v710, 2147483648
  %v723 = vor.u32 1.1754944e-38, %v722
  %v724 = vsel %vm721, %v723, %v719
  %v725 = vmul.f32 1.0, %v724
  %v726 = vtanh.pop %v706
  %v727 = vmul.f32 %v725, %v608
  %729 = vrot.lane.b32.xlu0 %v726, 64
  %v730 = vpop.permute.xlu0 %729
  %v732 = vmul.f32 %v725, %v730
  %734 = vrot.lane.b32.xlu0 %v732, 32
  %v735 = vpop.permute.xlu0 %734
  %v737 = vadd.f32 %v727, %v735
  %v738 = vtanh.pop %v737
  %740 = vrot.lane.b32.xlu0 %v738, 64
  %v741 = vpop.permute.xlu0 %740
  %v743 = vmul.f32 %v725, %v741
  %745 = vrot.lane.b32.xlu0 %v743, 32
  %v746 = vpop.permute.xlu0 %745
  %749 = vrot.lane.b32.xlu0 %v683, 64
  %v750 = vpop.permute.xlu0 %749
  %v752 = vsel %vm88, %v746, %v750
  %v754 = vsel %vm236, %v752, 0
  %756 = vmatpush.msra.mxu0 0.0
  %757 = vmatpush.msra.mxu0 0.0
  %758 = vmatpush.msra.mxu0 0.0
  %759 = vmatpush.msra.mxu0 0.0
  %760 = vmatpush.msra.mxu0 0.0
  %761 = vmatpush.msra.mxu0 0.0
  %762 = vmatpush.msra.mxu0 0.0
  %763 = vmatpush.msra.mxu0 0.0
  %764 = vmatpush.msra.mxu0 %v165
  %765 = vmatpush.msra.mxu0 %v164
  %766 = vmatpush.msra.mxu0 %v163
  %767 = vmatpush.msra.mxu0 %v162
  %768 = vmatpush.msra.mxu0 %v161
  %769 = vmatpush.msra.mxu0 %v160
  %770 = vmatpush.msra.mxu0 %v159
  %771 = vmatpush.msra.mxu0 %v158
  %772 = vmatmul.f32.gmra.mxu0 %v754
  %v773 = vpop.f32.mrf.mxu0
  %v774 = vadd.f32 %v168, %v773
  %775 = vdwg.mxu0
  %v776 = vxor.u32 %v774, 2147483648
  %v777 = vmul.f32 %v776, 1.442695
  %v778 = vpow.pop %v777
  %v779 = vadd.f32 %v778, 1.0
  %v780 = vrcp.pop %v779
  %v781 = vmul.f32 %v779, %v780
  %v782 = vsub.f32 1.0, %v781
  %v783 = vmul.f32 %v780, %v782
  %v784 = vadd.f32 %v780, %v783
  %vm785 = vweird.f32 %v779
  %vm786 = vweird.f32 %v780
  %vm787 = vmor %vm785, %vm786
  %v788 = vsel %vm787, %v780, %v784
  %v789 = vand.u32 2147483647, %v779
  %vm790 = vcmp.eq.f32.partialorder %v789, 8.507059e+37
  %v791 = vand.u32 %v779, 2147483648
  %v792 = vor.u32 1.1754944e-38, %v791
  %v793 = vsel %vm790, %v792, %v788
  %v794 = vmul.f32 1.0, %v793
  %v795 = vtanh.pop %v774
  %v796 = vmul.f32 %v794, %v677
  %798 = vrot.lane.b32.xlu0 %v795, 64
  %v799 = vpop.permute.xlu0 %798
  %v801 = vmul.f32 %v794, %v799
  %803 = vrot.lane.b32.xlu0 %v801, 32
  %v804 = vpop.permute.xlu0 %803
  %v806 = vadd.f32 %v796, %v804
  %v807 = vtanh.pop %v806
  %809 = vrot.lane.b32.xlu0 %v807, 64
  %v810 = vpop.permute.xlu0 %809
  %v812 = vmul.f32 %v794, %v810
  %v813 = vsel %vm88, %v746, 0
  %815 = vmatpush.msra.mxu0 0.0
  %816 = vmatpush.msra.mxu0 0.0
  %817 = vmatpush.msra.mxu0 0.0
  %818 = vmatpush.msra.mxu0 0.0
  %819 = vmatpush.msra.mxu0 0.0
  %820 = vmatpush.msra.mxu0 0.0
  %821 = vmatpush.msra.mxu0 0.0
  %822 = vmatpush.msra.mxu0 0.0
  %823 = vmatpush.msra.mxu0 0.0
  %824 = vmatpush.msra.mxu0 0.0
  %825 = vmatpush.msra.mxu0 0.0
  %826 = vmatpush.msra.mxu0 0.0
  %827 = vmatpush.msra.mxu0 %v157
  %828 = vmatpush.msra.mxu0 %v156
  %829 = vmatpush.msra.mxu0 %v155
  %830 = vmatpush.msra.mxu0 %v154
  %831 = vmatmul.f32.gmra.mxu0 %v813
  %v832 = vpop.f32.mrf.mxu0
  %v833 = vadd.f32 0.0, %v832
  %834 = vdwg.mxu0
  %v835 = vadd.f32 %v146, %v833
  %v836 = vxor.u32 %v835, 2147483648
  %v837 = vmul.f32 %v836, 1.442695
  %v838 = vpow.pop %v837
  %v839 = vadd.f32 %v838, 1.0
  %v840 = vrcp.pop %v839
  %v841 = vmul.f32 %v839, %v840
  %v842 = vsub.f32 1.0, %v841
  %v843 = vmul.f32 %v840, %v842
  %v844 = vadd.f32 %v840, %v843
  %vm845 = vweird.f32 %v839
  %vm846 = vweird.f32 %v840
  %vm847 = vmor %vm845, %vm846
  %v848 = vsel %vm847, %v840, %v844
  %v849 = vand.u32 2147483647, %v839
  %vm850 = vcmp.eq.f32.partialorder %v849, 8.507059e+37
  %v851 = vand.u32 %v839, 2147483648
  %v852 = vor.u32 1.1754944e-38, %v851
  %v853 = vsel %vm850, %v852, %v848
  %v854 = vmul.f32 1.0, %v853
  %v855 = vtanh.pop %v835
  %v856 = vmul.f32 %v854, %v737
  %858 = vrot.lane.b32.xlu0 %v855, 64
  %v859 = vpop.permute.xlu0 %858
  %v861 = vmul.f32 %v854, %v859
  %863 = vrot.lane.b32.xlu0 %v861, 32
  %v864 = vpop.permute.xlu0 %863
  %v866 = vadd.f32 %v856, %v864
  %v867 = vtanh.pop %v866
  %869 = vrot.lane.b32.xlu0 %v867, 64
  %v870 = vpop.permute.xlu0 %869
  %v872 = vmul.f32 %v854, %v870
  %874 = vrot.lane.b32.xlu0 %v872, 32
  %v875 = vpop.permute.xlu0 %874
  %878 = vrot.lane.b32.xlu0 %v812, 64
  %v879 = vpop.permute.xlu0 %878
  %v881 = vsel %vm88, %v875, %v879
  %v883 = vsel %vm236, %v881, 0
  %885 = vmatpush.msra.mxu0 0.0
  %886 = vmatpush.msra.mxu0 0.0
  %887 = vmatpush.msra.mxu0 0.0
  %888 = vmatpush.msra.mxu0 0.0
  %889 = vmatpush.msra.mxu0 0.0
  %890 = vmatpush.msra.mxu0 0.0
  %891 = vmatpush.msra.mxu0 0.0
  %892 = vmatpush.msra.mxu0 0.0
  %893 = vmatpush.msra.mxu0 %v165
  %894 = vmatpush.msra.mxu0 %v164
  %895 = vmatpush.msra.mxu0 %v163
  %896 = vmatpush.msra.mxu0 %v162
  %897 = vmatpush.msra.mxu0 %v161
  %898 = vmatpush.msra.mxu0 %v160
  %899 = vmatpush.msra.mxu0 %v159
  %900 = vmatpush.msra.mxu0 %v158
  %901 = vmatmul.f32.gmra.mxu0 %v883
  %v902 = vpop.f32.mrf.mxu0
  %v903 = vadd.f32 %v168, %v902
  %904 = vdwg.mxu0
  %v905 = vxor.u32 %v903, 2147483648
  %v906 = vmul.f32 %v905, 1.442695
  %v907 = vpow.pop %v906
  %v908 = vadd.f32 %v907, 1.0
  %v909 = vrcp.pop %v908
  %v910 = vmul.f32 %v908, %v909
  %v911 = vsub.f32 1.0, %v910
  %v912 = vmul.f32 %v909, %v911
  %v913 = vadd.f32 %v909, %v912
  %vm914 = vweird.f32 %v908
  %vm915 = vweird.f32 %v909
  %vm916 = vmor %vm914, %vm915
  %v917 = vsel %vm916, %v909, %v913
  %v918 = vand.u32 2147483647, %v908
  %vm919 = vcmp.eq.f32.partialorder %v918, 8.507059e+37
  %v920 = vand.u32 %v908, 2147483648
  %v921 = vor.u32 1.1754944e-38, %v920
  %v922 = vsel %vm919, %v921, %v917
  %v923 = vmul.f32 1.0, %v922
  %v924 = vtanh.pop %v903
  %v925 = vmul.f32 %v923, %v806
  %927 = vrot.lane.b32.xlu0 %v924, 64
  %v928 = vpop.permute.xlu0 %927
  %v930 = vmul.f32 %v923, %v928
  %932 = vrot.lane.b32.xlu0 %v930, 32
  %v933 = vpop.permute.xlu0 %932
  %v935 = vadd.f32 %v925, %v933
  %v936 = vtanh.pop %v935
  %938 = vrot.lane.b32.xlu0 %v936, 64
  %v939 = vpop.permute.xlu0 %938
  %v941 = vmul.f32 %v923, %v939
  %v942 = vsel %vm88, %v875, 0
  %944 = vmatpush.msra.mxu0 0.0
  %945 = vmatpush.msra.mxu0 0.0
  %946 = vmatpush.msra.mxu0 0.0
  %947 = vmatpush.msra.mxu0 0.0
  %948 = vmatpush.msra.mxu0 0.0
  %949 = vmatpush.msra.mxu0 0.0
  %950 = vmatpush.msra.mxu0 0.0
  %951 = vmatpush.msra.mxu0 0.0
  %952 = vmatpush.msra.mxu0 0.0
  %953 = vmatpush.msra.mxu0 0.0
  %954 = vmatpush.msra.mxu0 0.0
  %955 = vmatpush.msra.mxu0 0.0
  %956 = vmatpush.msra.mxu0 %v157
  %957 = vmatpush.msra.mxu0 %v156
  %958 = vmatpush.msra.mxu0 %v155
  %959 = vmatpush.msra.mxu0 %v154
  %960 = vmatmul.f32.gmra.mxu0 %v942
  %v961 = vpop.f32.mrf.mxu0
  %v962 = vadd.f32 0.0, %v961
  %963 = vdwg.mxu0
  %v964 = vadd.f32 %v149, %v962
  %v965 = vxor.u32 %v964, 2147483648
  %v966 = vmul.f32 %v965, 1.442695
  %v967 = vpow.pop %v966
  %v968 = vadd.f32 %v967, 1.0
  %v969 = vrcp.pop %v968
  %v970 = vmul.f32 %v968, %v969
  %v971 = vsub.f32 1.0, %v970
  %v972 = vmul.f32 %v969, %v971
  %v973 = vadd.f32 %v969, %v972
  %vm974 = vweird.f32 %v968
  %vm975 = vweird.f32 %v969
  %vm976 = vmor %vm974, %vm975
  %v977 = vsel %vm976, %v969, %v973
  %v978 = vand.u32 2147483647, %v968
  %vm979 = vcmp.eq.f32.partialorder %v978, 8.507059e+37
  %v980 = vand.u32 %v968, 2147483648
  %v981 = vor.u32 1.1754944e-38, %v980
  %v982 = vsel %vm979, %v981, %v977
  %v983 = vmul.f32 1.0, %v982
  %v984 = vtanh.pop %v964
  %v985 = vmul.f32 %v983, %v866
  %987 = vrot.lane.b32.xlu0 %v984, 64
  %v988 = vpop.permute.xlu0 %987
  %v990 = vmul.f32 %v983, %v988
  %992 = vrot.lane.b32.xlu0 %v990, 32
  %v993 = vpop.permute.xlu0 %992
  %v995 = vadd.f32 %v985, %v993
  %v996 = vtanh.pop %v995
  %998 = vrot.lane.b32.xlu0 %v996, 64
  %v999 = vpop.permute.xlu0 %998
  %v1001 = vmul.f32 %v983, %v999
  %1003 = vrot.lane.b32.xlu0 %v1001, 32
  %v1004 = vpop.permute.xlu0 %1003
  %1007 = vrot.lane.b32.xlu0 %v941, 64
  %v1008 = vpop.permute.xlu0 %1007
  %v1010 = vsel %vm88, %v1004, %v1008
  %v1012 = vsel %vm236, %v1010, 0
  %1014 = vmatpush.msra.mxu0 0.0
  %1015 = vmatpush.msra.mxu0 0.0
  %1016 = vmatpush.msra.mxu0 0.0
  %1017 = vmatpush.msra.mxu0 0.0
  %1018 = vmatpush.msra.mxu0 0.0
  %1019 = vmatpush.msra.mxu0 0.0
  %1020 = vmatpush.msra.mxu0 0.0
  %1021 = vmatpush.msra.mxu0 0.0
  %1022 = vmatpush.msra.mxu0 %v165
  %1023 = vmatpush.msra.mxu0 %v164
  %1024 = vmatpush.msra.mxu0 %v163
  %1025 = vmatpush.msra.mxu0 %v162
  %1026 = vmatpush.msra.mxu0 %v161
  %1027 = vmatpush.msra.mxu0 %v160
  %1028 = vmatpush.msra.mxu0 %v159
  %1029 = vmatpush.msra.mxu0 %v158
  %1030 = vmatmul.f32.gmra.mxu0 %v1012
  %v1031 = vpop.f32.mrf.mxu0
  %v1032 = vadd.f32 %v168, %v1031
  %1033 = vdwg.mxu0
  %v1034 = vxor.u32 %v1032, 2147483648
  %v1035 = vmul.f32 %v1034, 1.442695
  %v1036 = vpow.pop %v1035
  %v1037 = vadd.f32 %v1036, 1.0
  %v1038 = vrcp.pop %v1037
  %v1039 = vmul.f32 %v1037, %v1038
  %v1040 = vsub.f32 1.0, %v1039
  %v1041 = vmul.f32 %v1038, %v1040
  %v1042 = vadd.f32 %v1038, %v1041
  %vm1043 = vweird.f32 %v1037
  %vm1044 = vweird.f32 %v1038
  %vm1045 = vmor %vm1043, %vm1044
  %v1046 = vsel %vm1045, %v1038, %v1042
  %v1047 = vand.u32 2147483647, %v1037
  %vm1048 = vcmp.eq.f32.partialorder %v1047, 8.507059e+37
  %v1049 = vand.u32 %v1037, 2147483648
  %v1050 = vor.u32 1.1754944e-38, %v1049
  %v1051 = vsel %vm1048, %v1050, %v1046
  %v1052 = vmul.f32 1.0, %v1051
  %v1053 = vtanh.pop %v1032
  %v1054 = vmul.f32 %v1052, %v935
  %1056 = vrot.lane.b32.xlu0 %v1053, 64
  %v1057 = vpop.permute.xlu0 %1056
  %v1059 = vmul.f32 %v1052, %v1057
  %1061 = vrot.lane.b32.xlu0 %v1059, 32
  %v1062 = vpop.permute.xlu0 %1061
  %v1064 = vadd.f32 %v1054, %v1062
  %v1065 = vtanh.pop %v1064
  %1067 = vrot.lane.b32.xlu0 %v1065, 64
  %v1068 = vpop.permute.xlu0 %1067
  %v1070 = vmul.f32 %v1052, %v1068
  %v1071 = vsel %vm88, %v1004, 0
  %1073 = vmatpush.msra.mxu0 0.0
  %1074 = vmatpush.msra.mxu0 0.0
  %1075 = vmatpush.msra.mxu0 0.0
  %1076 = vmatpush.msra.mxu0 0.0
  %1077 = vmatpush.msra.mxu0 0.0
  %1078 = vmatpush.msra.mxu0 0.0
  %1079 = vmatpush.msra.mxu0 0.0
  %1080 = vmatpush.msra.mxu0 0.0
  %1081 = vmatpush.msra.mxu0 0.0
  %1082 = vmatpush.msra.mxu0 0.0
  %1083 = vmatpush.msra.mxu0 0.0
  %1084 = vmatpush.msra.mxu0 0.0
  %1085 = vmatpush.msra.mxu0 %v157
  %1086 = vmatpush.msra.mxu0 %v156
  %1087 = vmatpush.msra.mxu0 %v155
  %1088 = vmatpush.msra.mxu0 %v154
  %1089 = vmatmul.f32.gmra.mxu0 %v1071
  %v1090 = vpop.f32.mrf.mxu0
  %v1091 = vadd.f32 0.0, %v1090
  %1092 = vdwg.mxu0
  %v1093 = vadd.f32 %v152, %v1091
  %v1094 = vxor.u32 %v1093, 2147483648
  %v1095 = vmul.f32 %v1094, 1.442695
  %v1096 = vpow.pop %v1095
  %v1097 = vadd.f32 %v1096, 1.0
  %v1098 = vrcp.pop %v1097
  %v1099 = vmul.f32 %v1097, %v1098
  %v1100 = vsub.f32 1.0, %v1099
  %v1101 = vmul.f32 %v1098, %v1100
  %v1102 = vadd.f32 %v1098, %v1101
  %vm1103 = vweird.f32 %v1097
  %vm1104 = vweird.f32 %v1098
  %vm1105 = vmor %vm1103, %vm1104
  %v1106 = vsel %vm1105, %v1098, %v1102
  %v1107 = vand.u32 2147483647, %v1097
  %vm1108 = vcmp.eq.f32.partialorder %v1107, 8.507059e+37
  %v1109 = vand.u32 %v1097, 2147483648
  %v1110 = vor.u32 1.1754944e-38, %v1109
  %v1111 = vsel %vm1108, %v1110, %v1106
  %v1112 = vmul.f32 1.0, %v1111
  %v1113 = vtanh.pop %v1093
  %v1114 = vmul.f32 %v1112, %v995
  %1116 = vrot.lane.b32.xlu0 %v1113, 64
  %v1117 = vpop.permute.xlu0 %1116
  %v1119 = vmul.f32 %v1112, %v1117
  %1121 = vrot.lane.b32.xlu0 %v1119, 32
  %v1122 = vpop.permute.xlu0 %1121
  %v1124 = vadd.f32 %v1114, %v1122
  %v1125 = vtanh.pop %v1124
  %1127 = vrot.lane.b32.xlu0 %v1125, 64
  %v1128 = vpop.permute.xlu0 %1127
  %v1130 = vmul.f32 %v1112, %v1128
  %1132 = vrot.lane.b32.xlu0 %v1130, 32
  %v1133 = vpop.permute.xlu0 %1132
  %1136 = vrot.lane.b32.xlu0 %v1070, 64
  %v1137 = vpop.permute.xlu0 %1136
  %v1139 = vsel %vm88, %v1133, %v1137
  %v1141 = vsel %vm236, %v1139, 0
  %1143 = vmatpush.msra.mxu0 0.0
  %1144 = vmatpush.msra.mxu0 0.0
  %1145 = vmatpush.msra.mxu0 0.0
  %1146 = vmatpush.msra.mxu0 0.0
  %1147 = vmatpush.msra.mxu0 0.0
  %1148 = vmatpush.msra.mxu0 0.0
  %1149 = vmatpush.msra.mxu0 0.0
  %1150 = vmatpush.msra.mxu0 0.0
  %1151 = vmatpush.msra.mxu0 %v165
  %1152 = vmatpush.msra.mxu0 %v164
  %1153 = vmatpush.msra.mxu0 %v163
  %1154 = vmatpush.msra.mxu0 %v162
  %1155 = vmatpush.msra.mxu0 %v161
  %1156 = vmatpush.msra.mxu0 %v160
  %1157 = vmatpush.msra.mxu0 %v159
  %1158 = vmatpush.msra.mxu0 %v158
  %1159 = vmatmul.f32.gmra.mxu0 %v1141
  %v1160 = vpop.f32.mrf.mxu0
  %v1161 = vadd.f32 %v168, %v1160
  %1162 = vdwg.mxu0
  %v1163 = vxor.u32 %v1161, 2147483648
  %v1164 = vmul.f32 %v1163, 1.442695
  %v1165 = vpow.pop %v1164
  %v1166 = vadd.f32 %v1165, 1.0
  %v1167 = vrcp.pop %v1166
  %v1168 = vmul.f32 %v1166, %v1167
  %v1169 = vsub.f32 1.0, %v1168
  %v1170 = vmul.f32 %v1167, %v1169
  %v1171 = vadd.f32 %v1167, %v1170
  %vm1172 = vweird.f32 %v1166
  %vm1173 = vweird.f32 %v1167
  %vm1174 = vmor %vm1172, %vm1173
  %v1175 = vsel %vm1174, %v1167, %v1171
  %v1176 = vand.u32 2147483647, %v1166
  %vm1177 = vcmp.eq.f32.partialorder %v1176, 8.507059e+37
  %v1178 = vand.u32 %v1166, 2147483648
  %v1179 = vor.u32 1.1754944e-38, %v1178
  %v1180 = vsel %vm1177, %v1179, %v1175
  %v1181 = vmul.f32 1.0, %v1180
  %v1182 = vtanh.pop %v1161
  %v1183 = vmul.f32 %v1181, %v1064
  %1185 = vrot.lane.b32.xlu0 %v1182, 64
  %v1186 = vpop.permute.xlu0 %1185
  %v1188 = vmul.f32 %v1181, %v1186
  %1190 = vrot.lane.b32.xlu0 %v1188, 32
  %v1191 = vpop.permute.xlu0 %1190
  %v1193 = vadd.f32 %v1183, %v1191
  %v1194 = vtanh.pop %v1193
  %1196 = vrot.lane.b32.xlu0 %v1194, 64
  %v1197 = vpop.permute.xlu0 %1196
  %v1199 = vmul.f32 %v1181, %v1197
  %v1200 = vld [vmem:[%s5] sm:$0xff]
  %v1201 = vld [vmem:[%s5 + $0x8] sm:$0xff]
  %v1202 = vld [vmem:[%s5 + $0x10] sm:$0xff]
  %v1203 = vld [vmem:[%s5 + $0x18] sm:$0xff]
  %v1204 = vld [vmem:[%s6] sm:$0x1]
  %v1206 = vperm.slane %v1204, 0
  %1209 = vrot.lane.b32.xlu0 %v1199, 32
  %v1210 = vpop.permute.xlu0 %1209
  %v1211 = vsel %vm88, %v1210, 0
  %1213 = vmatpush.msra.mxu0 0.0
  %1214 = vmatpush.msra.mxu0 0.0
  %1215 = vmatpush.msra.mxu0 0.0
  %1216 = vmatpush.msra.mxu0 0.0
  %1217 = vmatpush.msra.mxu0 0.0
  %1218 = vmatpush.msra.mxu0 0.0
  %1219 = vmatpush.msra.mxu0 0.0
  %1220 = vmatpush.msra.mxu0 0.0
  %1221 = vmatpush.msra.mxu0 0.0
  %1222 = vmatpush.msra.mxu0 0.0
  %1223 = vmatpush.msra.mxu0 0.0
  %1224 = vmatpush.msra.mxu0 0.0
  %1225 = vmatpush.msra.mxu0 %v1203
  %1226 = vmatpush.msra.mxu0 %v1202
  %1227 = vmatpush.msra.mxu0 %v1201
  %1228 = vmatpush.msra.mxu0 %v1200
  %1229 = vmatmul.f32.gmra.mxu0 %v1211
  %v1230 = vpop.f32.mrf.mxu0
  %v1231 = vadd.f32 %v1206, %v1230
  %1232 = vdwg.mxu0
  %1233 = vst.msk [vmem:[%s7] sm:$0xff] %vm88, %v1231
  // Predicated region
  $region30: #{shakespeare_forward.1} parent=0 // pred_check
    _
  $region31: #{shakespeare_forward.1} parent=0 // pred_check_branch
    %1235 = sbr.rel (0) target = $region33
  $region32: #{shakespeare_forward.1} parent=0 // pred_region
    _
  $region33: #{shakespeare_forward.1} parent=0 // pred_fallthru
    _
  // Predicated region
  $region34: #{shakespeare_forward.1} parent=0 // pred_check
    _
  $region35: #{shakespeare_forward.1} parent=0 // pred_check_branch
    %1237 = sbr.rel (0) target = $region37
  $region36: #{shakespeare_forward.1} parent=0 // pred_region
    _
  $region37: #{shakespeare_forward.1} parent=0 // pred_fallthru
    _

</llo_original>
